<compile_context>
chip_gen: v7x
topology: tpu7x:2x2x1
jax: 0.10.0
libtpu: 0.0.40
codegen_flags: <defaults>
</compile_context>

<pallas_src>
import functools
import math

import jax
import jax.numpy as jnp
from jax import lax
from jax.experimental import pallas as pl
from jax.experimental.pallas import tpu as pltpu


def _round_up(x, m):
    return (x + m - 1) // m * m


def _pick_tile(tile_out):
    if tile_out is not None:
        return tile_out
    vmem = None
    try:
        vmem = getattr(pltpu.get_tpu_info(), "vmem_capacity_bytes", None)
    except Exception:
        vmem = None
    # 128 MiB-VMEM chips (v5e / v6e): larger tiles amortize per-step overhead.
    return 512 if (vmem is not None and vmem >= 100 * 1024 * 1024) else 256


def _warp_kernel(ws_ref, wl_ref, lhs_ref, row_ref, wgt_ref, out_ref, acc_ref,
                 *, k_blk, c_pad, n_tiles):
    # ws_ref / wl_ref : [N * n_tiles] int32 (SMEM, scalar-prefetched)
    #                   per-(batch, out-tile) window start (k_blk chunks) / length.
    # lhs_ref : (1, 16*c_pad, k_blk) bf16  current chunk of the hoisted
    #           8-corner x (hi, lo) image stack.
    # row_ref : (1, 1, T)  int32  floor-corner padded source row per voxel.
    # wgt_ref : (1, 8, T)  f32    trilinear corner weights (validity folded in).
    # out_ref : (1, c_pad, T) f32
    # acc_ref : (c_pad, T) f32    VMEM accumulator, resident across the k axis.
    n = pl.program_id(0)
    t = pl.program_id(1)
    k = pl.program_id(2)
    nk = pl.num_programs(2)
    idx = n * n_tiles + t

    @pl.when(k == 0)
    def _():
        acc_ref[...] = jnp.zeros_like(acc_ref)

    @pl.when(k < wl_ref[idx])
    def _():
        T = out_ref.shape[2]
        base = (ws_ref[idx] + k) * k_blk
        local = row_ref[0] - base                                    # [1, T]
        src_iota = lax.broadcasted_iota(jnp.int32, (k_blk, T), 0)
        m = (src_iota == local).astype(jnp.bfloat16)                 # [k_blk, T]
        # One bf16 MXU pass gathers all 8 corners for both hi/lo halves.
        gath = jnp.dot(lhs_ref[0], m, preferred_element_type=jnp.float32)
        half = 8 * c_pad
        gath = gath[:half, :] + gath[half:, :]                       # hi + lo
        acc = acc_ref[...]
        for j in range(8):
            acc = acc + gath[j * c_pad:(j + 1) * c_pad, :] * wgt_ref[0, j:j + 1, :]
        acc_ref[...] = acc

    @pl.when(k == nk - 1)
    def _():
        out_ref[0] = acc_ref[...].astype(out_ref.dtype)


def spatial_transform(mov_image, flow, *, tile_out=None, k_blk=512,
                      max_abs_flow=None):
    """mov_image: [N, C, D, H, W], flow: [N, D, H, W, 3] -> warped [N, C, D, H, W].

    Matches torch.nn.functional.grid_sample(mode='bilinear', align_corners=True,
    padding_mode='zeros') on sample_grid = base_grid + flow, as in the reference
    SpatialTransform module.  `max_abs_flow` (normalized units, optional) gives a
    static bound on the source-chunk reduction axis; None keeps the always-safe
    full bound (out-of-window chunks are skipped via pl.when at ~0.35us each).
    """
    N, C, D, H, W = mov_image.shape
    P = D * H * W
    HW = H * W
    max_off = HW + W + 1            # largest corner offset (dz=dy=dx=1)
    front = max_off                 # front zero-pad absorbs floor coords down to -1

    tile_out = _pick_tile(tile_out)
    tile_out = min(_round_up(tile_out, 128), _round_up(P, 128))
    P_pad = _round_up(P, tile_out)
    n_tiles = P_pad // tile_out
    C_pad = _round_up(C, 8)
    M = 16 * C_pad                  # 8 corners x (hi, lo) x channels

    k_blk = min(_round_up(k_blk, 128), _round_up(front + P, 128))
    L_src = _round_up(front + P, k_blk)
    nk_full = L_src // k_blk
    L_img = L_src + max_off

    # Static bound on how many source chunks one output tile can touch.
    if max_abs_flow is not None:
        reach = (math.ceil(abs(max_abs_flow) * 0.5 * (D - 1)) * HW
                 + math.ceil(abs(max_abs_flow) * 0.5 * (H - 1)) * W
                 + math.ceil(abs(max_abs_flow) * 0.5 * (W - 1)))
        nk = min(nk_full, (tile_out + 2 * reach) // k_blk + 2)
    else:
        nk = nk_full
    # TODO(synk): for very large volumes without a flow bound, nk_full makes the
    # (skipped) grid-step count quadratic-ish; pass max_abs_flow to bound it.

    # ---- hoisted 8-corner, hi/lo-split LHS stack: [N, 16*C_pad, L_src] bf16 ----
    img = jnp.zeros((N, C_pad, L_img), jnp.float32)
    img = img.at[:, :C, front:front + P].set(
        mov_image.reshape(N, C, P).astype(jnp.float32))
    hi = img.astype(jnp.bfloat16)
    lo = (img - hi.astype(jnp.float32)).astype(jnp.bfloat16)
    corner_offs = [dz * HW + dy * W + dx
                   for dz in (0, 1) for dy in (0, 1) for dx in (0, 1)]

    def stack_corners(x):
        return jnp.concatenate([x[:, :, o:o + L_src] for o in corner_offs], axis=1)

    lhs = jnp.concatenate([stack_corners(hi), stack_corners(lo)], axis=1)

    # ---- XLA pre-pass over flow: rows, trilinear weights, per-tile windows ----
    flow_f = flow.reshape(N, P, 3).astype(jnp.float32)
    p_idx = jnp.arange(P, dtype=jnp.int32)
    d = (p_idx // HW).astype(jnp.float32)
    h = ((p_idx // W) % H).astype(jnp.float32)
    w = (p_idx % W).astype(jnp.float32)
    # align_corners=True: the linspace(-1,1) base grid folds into integer coords.
    iz = d[None, :] + flow_f[..., 0] * (0.5 * (D - 1))
    iy = h[None, :] + flow_f[..., 1] * (0.5 * (H - 1))
    ix = w[None, :] + flow_f[..., 2] * (0.5 * (W - 1))
    z0f, y0f, x0f = jnp.floor(iz), jnp.floor(iy), jnp.floor(ix)
    z0 = z0f.astype(jnp.int32)
    y0 = y0f.astype(jnp.int32)
    x0 = x0f.astype(jnp.int32)
    tz, ty, tx = iz - z0f, iy - y0f, ix - x0f

    # Floor-corner padded source row; clipping only ever affects voxels whose
    # total trilinear weight is zero (all 8 corners out of bounds).
    row = jnp.clip(z0 * HW + y0 * W + x0 + front, 0, front + P - 1)

    wz = (1.0 - tz, tz)
    wy = (1.0 - ty, ty)
    wx = (1.0 - tx, tx)
    vz = ((z0 >= 0) & (z0 < D), (z0 + 1 >= 0) & (z0 + 1 < D))
    vy = ((y0 >= 0) & (y0 < H), (y0 + 1 >= 0) & (y0 + 1 < H))
    vx = ((x0 >= 0) & (x0 < W), (x0 + 1 >= 0) & (x0 + 1 < W))
    wgt = jnp.stack(
        [wz[dz] * wy[dy] * wx[dx] * (vz[dz] & vy[dy] & vx[dx]).astype(jnp.float32)
         for dz in (0, 1) for dy in (0, 1) for dx in (0, 1)], axis=1)   # [N, 8, P]

    row_pad = jnp.pad(row, ((0, 0), (0, P_pad - P)), mode="edge")       # keep windows tight
    wgt_pad = jnp.pad(wgt, ((0, 0), (0, 0), (0, P_pad - P)))            # zero weight in pad
    row_in = row_pad[:, None, :]                                        # [N, 1, P_pad]

    # Per-(batch, out-tile) source window, in units of k_blk chunks.
    row_tiles = row_pad.reshape(N, n_tiles, tile_out)
    ws = (row_tiles.min(axis=-1) // k_blk).astype(jnp.int32)
    we = (row_tiles.max(axis=-1) // k_blk).astype(jnp.int32)
    we = jnp.minimum(jnp.maximum(we, ws), ws + (nk - 1))
    wl = (we - ws + 1).astype(jnp.int32)
    ws = ws.reshape(N * n_tiles)
    wl = wl.reshape(N * n_tiles)

    kernel = functools.partial(_warp_kernel, k_blk=k_blk, c_pad=C_pad,
                               n_tiles=n_tiles)

    cost = pl.CostEstimate(
        flops=2 * N * n_tiles * 2 * M * k_blk * tile_out,   # ~2 in-window chunks / tile
        transcendentals=0,
        bytes_accessed=int(lhs.size) * 2 + int(row_in.size) * 4
        + int(wgt_pad.size) * 4 + N * C_pad * P_pad * 4)

    out = pl.pallas_call(
        kernel,
        out_shape=jax.ShapeDtypeStruct((N, C_pad, P_pad), jnp.float32),
        grid_spec=pltpu.PrefetchScalarGridSpec(
            num_scalar_prefetch=2,
            grid=(N, n_tiles, nk),
            in_specs=[
                # windowed chunk of the hoisted corner stack; index repeats once
                # the window is exhausted so the DMA is skipped for padded steps
                pl.BlockSpec(
                    (1, M, k_blk),
                    lambda n, t, k, ws_r, wl_r:
                        (n, 0, ws_r[n * n_tiles + t]
                         + jnp.minimum(k, wl_r[n * n_tiles + t] - 1))),
                pl.BlockSpec((1, 1, tile_out), lambda n, t, k, ws_r, wl_r: (n, 0, t)),
                pl.BlockSpec((1, 8, tile_out), lambda n, t, k, ws_r, wl_r: (n, 0, t)),
            ],
            out_specs=pl.BlockSpec((1, C_pad, tile_out),
                                   lambda n, t, k, ws_r, wl_r: (n, 0, t)),
            scratch_shapes=[pltpu.VMEM((C_pad, tile_out), jnp.float32)],
        ),
        compiler_params=pltpu.CompilerParams(
            # TODO(synk): verify the tile axis actually shards across v7x's two
            # TensorCores with plain "parallel"; switch to CORE_PARALLEL if not.
            dimension_semantics=("parallel", "parallel", "arbitrary"),
        ),
        cost_estimate=cost,
    )(ws, wl, lhs, row_in, wgt_pad)

    if C_pad != C or P_pad != P:
        out = out[:, :C, :P]
    return out.reshape(N, C, D, H, W)


def spatial_transform_ref(mov_image, flow):
    """Pure-JAX reference (same semantics as torch grid_sample, trilinear,
    align_corners=True, zeros padding)."""
    N, C, D, H, W = mov_image.shape
    gd, gh, gw = jnp.meshgrid(jnp.linspace(-1.0, 1.0, D),
                              jnp.linspace(-1.0, 1.0, H),
                              jnp.linspace(-1.0, 1.0, W), indexing="ij")
    z = gd[None] + flow[..., 0]
    y = gh[None] + flow[..., 1]
    x = gw[None] + flow[..., 2]
    iz = (z + 1.0) * 0.5 * (D - 1)
    iy = (y + 1.0) * 0.5 * (H - 1)
    ix = (x + 1.0) * 0.5 * (W - 1)
    z0 = jnp.floor(iz).astype(jnp.int32)
    y0 = jnp.floor(iy).astype(jnp.int32)
    x0 = jnp.floor(ix).astype(jnp.int32)
    tz = iz - z0
    ty = iy - y0
    tx = ix - x0

    def one(img, z0, y0, x0, tz, ty, tx):
        acc = jnp.zeros_like(img)
        for dz in (0, 1):
            zc = z0 + dz
            wz = tz if dz else (1.0 - tz)
            vz = (zc >= 0) & (zc < D)
            for dy in (0, 1):
                yc = y0 + dy
                wy = ty if dy else (1.0 - ty)
                vy = (yc >= 0) & (yc < H)
                for dx in (0, 1):
                    xc = x0 + dx
                    wx = tx if dx else (1.0 - tx)
                    vx = (xc >= 0) & (xc < W)
                    wgt = wz * wy * wx * (vz & vy & vx).astype(img.dtype)
                    vals = img[:, jnp.clip(zc, 0, D - 1),
                                  jnp.clip(yc, 0, H - 1),
                                  jnp.clip(xc, 0, W - 1)]
                    acc = acc + vals * wgt[None]
        return acc

    return jax.vmap(one)(mov_image, z0, y0, x0, tz, ty, tx)


if __name__ == "__main__":
    key = jax.random.PRNGKey(0)
    k1, k2 = jax.random.split(key)

    N, C, D, H, W = 2, 4, 8, 8, 8
    mov_image = jax.random.normal(k1, (N, C, D, H, W), dtype=jnp.float32)
    # moderate displacements so some samples land out of bounds (tests zero padding)
    flow = 0.3 * jax.random.normal(k2, (N, D, H, W, 3), dtype=jnp.float32)

    warped = spatial_transform(mov_image, flow)
    warped = jax.block_until_ready(warped)

    ref = spatial_transform_ref(mov_image, flow)
    assert warped.shape == (N, C, D, H, W)
    assert jnp.allclose(warped, ref, atol=1e-4, rtol=1e-4), \
        float(jnp.max(jnp.abs(warped - ref)))

    print("KERNEL_OK")
</pallas_src>

<mosaic_0001>
module attributes {stable_mosaic.version = 11 : i64} {
  func.func @_warp_kernel(%arg0: i32, %arg1: i32, %arg2: i32, %arg3: memref<4xi32, #tpu.memory_space<smem>>, %arg4: memref<4xi32, #tpu.memory_space<smem>>, %arg5: memref<1x128x512xbf16, #tpu.memory_space<vmem>>, %arg6: memref<1x1x256xi32, #tpu.memory_space<vmem>>, %arg7: memref<1x8x256xf32, #tpu.memory_space<vmem>>, %arg8: memref<1x8x256xf32, #tpu.memory_space<vmem>>, %arg9: memref<8x256xf32, #tpu.memory_space<vmem>>) attributes {dimension_semantics = [#tpu.dimension_semantics<parallel>, #tpu.dimension_semantics<parallel>, #tpu.dimension_semantics<arbitrary>], iteration_bounds = array<i64: 2, 2, 2>, scalar_prefetch = 2 : i64, scratch_operands = 1 : i64, tpu.core_type = #tpu.core_type<tc>, window_params = [{transform_indices = @transform_0, window_bounds = array<i64: 1, 128, 512>}, {transform_indices = @transform_1, window_bounds = array<i64: 1, 1, 256>}, {transform_indices = @transform_2, window_bounds = array<i64: 1, 8, 256>}, {transform_indices = @transform_3, window_bounds = array<i64: 1, 8, 256>}]} {
    %c2_i32 = arith.constant 2 : i32
    %0 = arith.muli %arg0, %c2_i32 : i32
    %1 = arith.addi %0, %arg1 : i32
    %c0_i32 = arith.constant 0 : i32
    %2 = arith.cmpi eq, %arg2, %c0_i32 : i32
    %3 = arith.extui %2 : i1 to i32
    %c0_i32_0 = arith.constant 0 : i32
    %4 = arith.cmpi ne, %3, %c0_i32_0 : i32
    scf.if %4 {
      %cst = arith.constant 0.000000e+00 : f32
      %13 = vector.broadcast %cst : f32 to vector<8x256xf32>
      %c0 = arith.constant 0 : index
      %c0_3 = arith.constant 0 : index
      %14 = vector.load %arg9[%c0, %c0_3] : memref<8x256xf32, #tpu.memory_space<vmem>>, vector<8x256xf32>
      tpu.vector_store %arg9[%c0, %c0_3], %13 {strides = array<i32>} : memref<8x256xf32, #tpu.memory_space<vmem>>, vector<8x256xf32>,
    } else {
    }
    %5 = arith.index_cast %1 : i32 to index
    %6 = memref.load %arg4[%5] : memref<4xi32, #tpu.memory_space<smem>>
    %7 = arith.cmpi slt, %arg2, %6 : i32
    %8 = arith.extui %7 : i1 to i32
    %c0_i32_1 = arith.constant 0 : i32
    %9 = arith.cmpi ne, %8, %c0_i32_1 : i32
    scf.if %9 {
      %13 = arith.index_cast %1 : i32 to index
      %14 = memref.load %arg3[%13] : memref<4xi32, #tpu.memory_space<smem>>
      %15 = arith.addi %14, %arg2 : i32
      %c512_i32 = arith.constant 512 : i32
      %16 = arith.muli %15, %c512_i32 : i32
      %c0 = arith.constant 0 : index
      %c0_3 = arith.constant 0 : index
      %c0_4 = arith.constant 0 : index
      %17 = vector.load %arg6[%c0, %c0_3, %c0_4] : memref<1x1x256xi32, #tpu.memory_space<vmem>>, vector<1x1x256xi32>
      %18 = vector.shape_cast %17 : vector<1x1x256xi32> to vector<1x256xi32>
      %19 = vector.broadcast %16 : i32 to vector<1x256xi32>
      %20 = arith.subi %18, %19 : vector<1x256xi32>
      %21 = tpu.iota {dimensions = array<i32: 0>} : vector<512x256xi32>
      %22 = vector.broadcast %20 : vector<1x256xi32> to vector<512x256xi32>
      %23 = arith.cmpi eq, %21, %22 : vector<512x256xi32>
      %24 = arith.extui %23 : vector<512x256xi1> to vector<512x256xi32>
      %25 = arith.sitofp %24 : vector<512x256xi32> to vector<512x256xf32>
      %26 = arith.truncf %25 : vector<512x256xf32> to vector<512x256xbf16>
      %c0_5 = arith.constant 0 : index
      %c0_6 = arith.constant 0 : index
      %c0_7 = arith.constant 0 : index
      %27 = vector.load %arg5[%c0_5, %c0_6, %c0_7] : memref<1x128x512xbf16, #tpu.memory_space<vmem>>, vector<1x128x512xbf16>
      %28 = vector.shape_cast %27 : vector<1x128x512xbf16> to vector<128x512xbf16>
      %cst = arith.constant dense<0.000000e+00> : vector<128x256xf32>
      %29 = tpu.matmul %28, %26, %cst {dimension_numbers = #tpu.dot_dimension_numbers<[1], [0], [0], [1], [0, 0, 1, 1], [], []>} : vector<128x512xbf16>, vector<512x256xbf16>, vector<128x256xf32> -> vector<128x256xf32>
      %30 = vector.extract_strided_slice %29 {offsets = [0, 0], sizes = [64, 256], strides = [1, 1]} : vector<128x256xf32> to vector<64x256xf32>
      %31 = vector.extract_strided_slice %29 {offsets = [64, 0], sizes = [64, 256], strides = [1, 1]} : vector<128x256xf32> to vector<64x256xf32>
      %32 = arith.addf %30, %31 : vector<64x256xf32>
      %c0_8 = arith.constant 0 : index
      %c0_9 = arith.constant 0 : index
      %33 = vector.load %arg9[%c0_8, %c0_9] : memref<8x256xf32, #tpu.memory_space<vmem>>, vector<8x256xf32>
      %34 = vector.extract_strided_slice %32 {offsets = [0, 0], sizes = [8, 256], strides = [1, 1]} : vector<64x256xf32> to vector<8x256xf32>
      %c0_10 = arith.constant 0 : index
      %c0_11 = arith.constant 0 : index
      %c0_12 = arith.constant 0 : index
      %35 = vector.load %arg7[%c0_10, %c0_11, %c0_12] : memref<1x8x256xf32, #tpu.memory_space<vmem>>, vector<1x1x256xf32>
      %36 = vector.shape_cast %35 : vector<1x1x256xf32> to vector<1x256xf32>
      %37 = vector.broadcast %36 : vector<1x256xf32> to vector<8x256xf32>
      %38 = arith.mulf %34, %37 : vector<8x256xf32>
      %39 = arith.addf %33, %38 : vector<8x256xf32>
      %40 = vector.extract_strided_slice %32 {offsets = [8, 0], sizes = [8, 256], strides = [1, 1]} : vector<64x256xf32> to vector<8x256xf32>
      %c0_13 = arith.constant 0 : index
      %c1 = arith.constant 1 : index
      %c0_14 = arith.constant 0 : index
      %41 = vector.load %arg7[%c0_13, %c1, %c0_14] : memref<1x8x256xf32, #tpu.memory_space<vmem>>, vector<1x1x256xf32>
      %42 = vector.shape_cast %41 : vector<1x1x256xf32> to vector<1x256xf32>
      %43 = vector.broadcast %42 : vector<1x256xf32> to vector<8x256xf32>
      %44 = arith.mulf %40, %43 : vector<8x256xf32>
      %45 = arith.addf %39, %44 : vector<8x256xf32>
      %46 = vector.extract_strided_slice %32 {offsets = [16, 0], sizes = [8, 256], strides = [1, 1]} : vector<64x256xf32> to vector<8x256xf32>
      %c0_15 = arith.constant 0 : index
      %c2 = arith.constant 2 : index
      %c0_16 = arith.constant 0 : index
      %47 = vector.load %arg7[%c0_15, %c2, %c0_16] : memref<1x8x256xf32, #tpu.memory_space<vmem>>, vector<1x1x256xf32>
      %48 = vector.shape_cast %47 : vector<1x1x256xf32> to vector<1x256xf32>
      %49 = vector.broadcast %48 : vector<1x256xf32> to vector<8x256xf32>
      %50 = arith.mulf %46, %49 : vector<8x256xf32>
      %51 = arith.addf %45, %50 : vector<8x256xf32>
      %52 = vector.extract_strided_slice %32 {offsets = [24, 0], sizes = [8, 256], strides = [1, 1]} : vector<64x256xf32> to vector<8x256xf32>
      %c0_17 = arith.constant 0 : index
      %c3 = arith.constant 3 : index
      %c0_18 = arith.constant 0 : index
      %53 = vector.load %arg7[%c0_17, %c3, %c0_18] : memref<1x8x256xf32, #tpu.memory_space<vmem>>, vector<1x1x256xf32>
      %54 = vector.shape_cast %53 : vector<1x1x256xf32> to vector<1x256xf32>
      %55 = vector.broadcast %54 : vector<1x256xf32> to vector<8x256xf32>
      %56 = arith.mulf %52, %55 : vector<8x256xf32>
      %57 = arith.addf %51, %56 : vector<8x256xf32>
      %58 = vector.extract_strided_slice %32 {offsets = [32, 0], sizes = [8, 256], strides = [1, 1]} : vector<64x256xf32> to vector<8x256xf32>
      %c0_19 = arith.constant 0 : index
      %c4 = arith.constant 4 : index
      %c0_20 = arith.constant 0 : index
      %59 = vector.load %arg7[%c0_19, %c4, %c0_20] : memref<1x8x256xf32, #tpu.memory_space<vmem>>, vector<1x1x256xf32>
      %60 = vector.shape_cast %59 : vector<1x1x256xf32> to vector<1x256xf32>
      %61 = vector.broadcast %60 : vector<1x256xf32> to vector<8x256xf32>
      %62 = arith.mulf %58, %61 : vector<8x256xf32>
      %63 = arith.addf %57, %62 : vector<8x256xf32>
      %64 = vector.extract_strided_slice %32 {offsets = [40, 0], sizes = [8, 256], strides = [1, 1]} : vector<64x256xf32> to vector<8x256xf32>
      %c0_21 = arith.constant 0 : index
      %c5 = arith.constant 5 : index
      %c0_22 = arith.constant 0 : index
      %65 = vector.load %arg7[%c0_21, %c5, %c0_22] : memref<1x8x256xf32, #tpu.memory_space<vmem>>, vector<1x1x256xf32>
      %66 = vector.shape_cast %65 : vector<1x1x256xf32> to vector<1x256xf32>
      %67 = vector.broadcast %66 : vector<1x256xf32> to vector<8x256xf32>
      %68 = arith.mulf %64, %67 : vector<8x256xf32>
      %69 = arith.addf %63, %68 : vector<8x256xf32>
      %70 = vector.extract_strided_slice %32 {offsets = [48, 0], sizes = [8, 256], strides = [1, 1]} : vector<64x256xf32> to vector<8x256xf32>
      %c0_23 = arith.constant 0 : index
      %c6 = arith.constant 6 : index
      %c0_24 = arith.constant 0 : index
      %71 = vector.load %arg7[%c0_23, %c6, %c0_24] : memref<1x8x256xf32, #tpu.memory_space<vmem>>, vector<1x1x256xf32>
      %72 = vector.shape_cast %71 : vector<1x1x256xf32> to vector<1x256xf32>
      %73 = vector.broadcast %72 : vector<1x256xf32> to vector<8x256xf32>
      %74 = arith.mulf %70, %73 : vector<8x256xf32>
      %75 = arith.addf %69, %74 : vector<8x256xf32>
      %76 = vector.extract_strided_slice %32 {offsets = [56, 0], sizes = [8, 256], strides = [1, 1]} : vector<64x256xf32> to vector<8x256xf32>
      %c0_25 = arith.constant 0 : index
      %c7 = arith.constant 7 : index
      %c0_26 = arith.constant 0 : index
      %77 = vector.load %arg7[%c0_25, %c7, %c0_26] : memref<1x8x256xf32, #tpu.memory_space<vmem>>, vector<1x1x256xf32>
      %78 = vector.shape_cast %77 : vector<1x1x256xf32> to vector<1x256xf32>
      %79 = vector.broadcast %78 : vector<1x256xf32> to vector<8x256xf32>
      %80 = arith.mulf %76, %79 : vector<8x256xf32>
      %81 = arith.addf %75, %80 : vector<8x256xf32>
      %c0_27 = arith.constant 0 : index
      %c0_28 = arith.constant 0 : index
      %82 = vector.load %arg9[%c0_27, %c0_28] : memref<8x256xf32, #tpu.memory_space<vmem>>, vector<8x256xf32>
      tpu.vector_store %arg9[%c0_27, %c0_28], %81 {strides = array<i32>} : memref<8x256xf32, #tpu.memory_space<vmem>>, vector<8x256xf32>,
    } else {
    }
    %c1_i32 = arith.constant 1 : i32
    %10 = arith.cmpi eq, %arg2, %c1_i32 : i32
    %11 = arith.extui %10 : i1 to i32
    %c0_i32_2 = arith.constant 0 : i32
    %12 = arith.cmpi ne, %11, %c0_i32_2 : i32
    scf.if %12 {
      %c0 = arith.constant 0 : index
      %c0_3 = arith.constant 0 : index
      %13 = vector.load %arg9[%c0, %c0_3] : memref<8x256xf32, #tpu.memory_space<vmem>>, vector<8x256xf32>
      %c0_4 = arith.constant 0 : index
      %c0_5 = arith.constant 0 : index
      %c0_6 = arith.constant 0 : index
      %14 = vector.load %arg8[%c0_4, %c0_5, %c0_6] : memref<1x8x256xf32, #tpu.memory_space<vmem>>, vector<1x8x256xf32>
      %15 = vector.shape_cast %14 : vector<1x8x256xf32> to vector<8x256xf32>
      %16 = vector.shape_cast %13 : vector<8x256xf32> to vector<1x8x256xf32>
      tpu.vector_store %arg8[%c0_4, %c0_5, %c0_6], %16 {strides = array<i32>} : memref<1x8x256xf32, #tpu.memory_space<vmem>>, vector<1x8x256xf32>,
    } else {
    }
    return
  }
  func.func @transform_0(%arg0: i32, %arg1: i32, %arg2: i32, %arg3: memref<4xi32, #tpu.memory_space<smem>>, %arg4: memref<4xi32, #tpu.memory_space<smem>>) -> (i32, i32, i32) {
    %c2_i32 = arith.constant 2 : i32
    %0 = arith.muli %arg0, %c2_i32 : i32
    %1 = arith.addi %0, %arg1 : i32
    %2 = arith.index_cast %1 : i32 to index
    %3 = memref.load %arg3[%2] : memref<4xi32, #tpu.memory_space<smem>>
    %c2_i32_0 = arith.constant 2 : i32
    %4 = arith.muli %arg0, %c2_i32_0 : i32
    %5 = arith.addi %4, %arg1 : i32
    %6 = arith.index_cast %5 : i32 to index
    %7 = memref.load %arg4[%6] : memref<4xi32, #tpu.memory_space<smem>>
    %c1_i32 = arith.constant 1 : i32
    %8 = arith.subi %7, %c1_i32 : i32
    %9 = arith.minsi %arg2, %8 : i32
    %10 = arith.addi %3, %9 : i32
    %c0_i32 = arith.constant 0 : i32
    %c0_i32_1 = arith.constant 0 : i32
    return %arg0, %c0_i32, %10 : i32, i32, i32
  }
  func.func @transform_1(%arg0: i32, %arg1: i32, %arg2: i32, %arg3: memref<4xi32, #tpu.memory_space<smem>>, %arg4: memref<4xi32, #tpu.memory_space<smem>>) -> (i32, i32, i32) {
    %c0_i32 = arith.constant 0 : i32
    %c0_i32_0 = arith.constant 0 : i32
    return %arg0, %c0_i32, %arg1 : i32, i32, i32
  }
  func.func @transform_2(%arg0: i32, %arg1: i32, %arg2: i32, %arg3: memref<4xi32, #tpu.memory_space<smem>>, %arg4: memref<4xi32, #tpu.memory_space<smem>>) -> (i32, i32, i32) {
    %c0_i32 = arith.constant 0 : i32
    %c0_i32_0 = arith.constant 0 : i32
    return %arg0, %c0_i32, %arg1 : i32, i32, i32
  }
  func.func @transform_3(%arg0: i32, %arg1: i32, %arg2: i32, %arg3: memref<4xi32, #tpu.memory_space<smem>>, %arg4: memref<4xi32, #tpu.memory_space<smem>>) -> (i32, i32, i32) {
    %c0_i32 = arith.constant 0 : i32
    %c0_i32_0 = arith.constant 0 : i32
    return %arg0, %c0_i32, %arg1 : i32, i32, i32
  }
}

</mosaic_0001>

<llo_original>
// kernel: tpu_custom_call.1
$region0: #{tpu_custom_call.1}
  #allocation0 [shape = 'u32[]', space=smem, size = 0x4, offset = 0x4, fixed_abs, tag = 'smem constant byte address 0x4 - core index']
  #allocation1 [shape = 'u32[144,128]{1,0:T(1,128)}', space=vmem, size = 0x12000, scoped, tag = 'internal scratch']
  #allocation2 [shape = 'f32[8,256]{1,0:T(8,128)}', space=vmem, size = 0x2000, scoped, tag = 'scratch operand']
  #allocation3 [shape = 's32[1]{0}', space=sflag, size = 0x4, scoped, tag = 'scoped memory for tpu_custom_call.1']
  #allocation4 [shape = 'u8[512]{0}', space=smem, size = 0x200, scoped, tag = 'prefetched SMEM operand 0']
  #allocation5 [shape = 'u8[512]{0}', space=smem, size = 0x200, scoped, tag = 'prefetched SMEM operand 1']
  %s0 = inlined_call_operand.hbm [shape: s32[4], index: 0, kind: input, shape index: {}]
  %s1 = inlined_call_operand.vmem [shape: s32[4], index: 1, kind: input, shape index: {}]
  %s2 = inlined_call_operand.hbm [shape: bf16[2,128,1024], index: 2, kind: input, shape index: {}]
  %s3 = inlined_call_operand.vmem [shape: s32[2,1,512], index: 3, kind: input, shape index: {}]
  %s4 = inlined_call_operand.hbm [shape: f32[2,8,512], index: 4, kind: input, shape index: {}]
  %s5 = inlined_call_operand.hbm [shape: f32[2,8,512], index: 5, kind: output, shape index: {}]
  %s6 = sld [smem:[#allocation0]]
  $region65: #{tpu_custom_call.1} parent=0
    _
  %s8 = ssub.s32 1, %s6
  %s9 = scalar_select 0, %s8, %s6
  %11 = dma.hbm_to_smem %s0, 16, [#allocation4], [#allocation3]
  %s12 = sshll.u32 %s1, 4
  %s13 = int_to_ptr.vmem [resolvable:$true] %s12
  %15 = dma.vmem_to_smem %s13, 16, [#allocation5], [#allocation3]
  %16 = dma.done [#allocation3], 32
  %17 = sfence
  $region1: #{tpu_custom_call.1} parent=0
    #allocation6 [shape = 'u8[262144]{0}', space=vmem, size = 0x40000, scoped, tag = 'input window, operand 2']
    #allocation7 [shape = 's32[2]{0}', space=sflag, size = 0x8, scoped, tag = 'scoped memory for tpu_custom_call.1']
    #allocation8 [shape = 's32[2]{0}', space=sflag, size = 0x8, scoped, tag = 'scoped memory for tpu_custom_call.1']
    #allocation9 [shape = 'u8[16384]{0}', space=vmem, size = 0x4000, scoped, tag = 'input window, operand 4']
    #allocation10 [shape = 's32[2]{0}', space=sflag, size = 0x8, scoped, tag = 'scoped memory for tpu_custom_call.1']
    #allocation11 [shape = 'u8[16384]{0}', space=vmem, size = 0x4000, scoped, tag = 'output window, operand 0']
    %18 = vsyncpa [#allocation7], 0
    %s19 = scalar_lea.sflag [#allocation7], 1
    %20 = vsyncpa %s19, 0
    %21 = vsyncpa [#allocation10], 0
    %s22 = scalar_lea.sflag [#allocation10], 1
    %23 = vsyncpa %s22, 0
    %24 = vsyncpa [#allocation8], 0
    %s25 = scalar_lea.sflag [#allocation8], 1
    %26 = vsyncpa %s25, 0
    loop: start=0, step=1, limit=10
    $region2: #{tpu_custom_call.1} parent=1 // loop_pre_header
      _
    $region3: #{tpu_custom_call.1} parent=1 // loop_header
      %s28 = sphi 0, %s32
      %p29 = scmp.ge.s32.totalorder %s28, 10
      %s35 = sphi 0, %s54
      %s36 = sphi 0, %s50
      %s37 = sphi 0, %s46
      %s38 = sphi 0, %s35
      %s39 = sphi 0, %s36
      %s40 = sphi 0, %s37
      %s41 = sphi 0, %s38
      %s42 = sphi 0, %s39
      %s43 = sphi 0, %s40
      %s75 = sphi 0, %s77
      %s78 = sphi 0, %s75
      %s79 = sphi 0, %s78
      %s95 = sphi 0, %s79
      %s103 = sphi 0, %s105
      %s106 = sphi 0, %s103
      %s107 = sphi 0, %s106
      %s123 = sphi 0, %s107
      %s131 = sphi 0, %s133
      %s134 = sphi 0, %s131
      %s135 = sphi 0, %s134
      %s151 = sphi 0, %s135
      %s159 = sphi 0, %s161
      %s162 = sphi 0, %s159
      %s163 = sphi 0, %s162
      %s179 = sphi 0, %s163
    $region4: #{tpu_custom_call.1} parent=1 // loop_header_branch
      %31 = sbr.rel (%p29) target = $region8
    $region5: #{tpu_custom_call.1} parent=1 // loop_body
      %s33 = ssub.s32 %s28, 1
      %s34 = ssub.s32 %s28, 2
      %s44 = sadd.s32 1, %s37
      %p45 = scmp.ge.s32.totalorder %s44, 2
      %s46 = scalar_select %p45, 0, %s44
      %s47 = sadd.s32 1, %s36
      %s48 = scalar_select %p45, %s47, %s36
      %p49 = scmp.ge.s32.totalorder %s48, 2
      %s50 = scalar_select %p49, 0, %s48
      %s51 = sadd.s32 1, %s35
      %s52 = scalar_select %p49, %s51, %s35
      %p53 = scmp.ge.s32.totalorder %s52, 2
      %s54 = scalar_select %p53, 0, %s52
      %s55 = smul.u32 %s35, 2
      %s56 = sadd.s32 %s55, %s36
      %s57 = sld [smem:[#allocation4 + %s56]]
      %s58 = sld [smem:[#allocation5 + %s56]]
      %s59 = ssub.s32 %s58, 1
      %p60 = scmp.lt.s32.totalorder %s37, %s59
      %s61 = scalar_select %p60, %s37, %s59
      %s62 = sadd.s32 %s57, %s61
      %s63 = smul.u32 %s54, 2
      %s64 = sadd.s32 %s63, %s50
      %s65 = sld [smem:[#allocation4 + %s64]]
      %s66 = sld [smem:[#allocation5 + %s64]]
      %s67 = ssub.s32 %s66, 1
      %p68 = scmp.lt.s32.totalorder %s46, %s67
      %s69 = scalar_select %p68, %s46, %s67
      %s70 = sadd.s32 %s65, %s69
      %s71 = ssub.s32 %s35, %s54
      %s72 = ssub.s32 %s62, %s70
      %s73 = sor.u32 %s71, %s72
      %p74 = scmp.eq.s32.totalorder %s73, 0
      %s76 = sadd.s32 %s75, 1
      %s77 = scalar_select %p74, %s75, %s76
      %p80 = pneg %p74
      %p81 = scmp.eq.s32.totalorder %s28, 7
      %p82 = por %p80, %p81
      %p83 = scmp.ne.s32.totalorder %s75, %s78
      %p84 = scmp.eq.s32.totalorder %s28, 0
      %p85 = por %p83, %p84
      %p86 = scmp.ne.s32.totalorder %s75, %s78
      %p87 = scmp.eq.s32.totalorder %s33, 7
      %p88 = por %p86, %p87
      %p89 = scmp.ne.s32.totalorder %s78, %s79
      %p90 = scmp.eq.s32.totalorder %s33, 0
      %p91 = por %p89, %p90
      %p92 = scmp.ne.s32.totalorder %s78, %s79
      %p93 = scmp.eq.s32.totalorder %s34, 7
      %p94 = por %p92, %p93
      %p96 = scmp.ne.s32.totalorder %s79, %s95
      %p97 = scmp.eq.s32.totalorder %s34, 0
      %p98 = por %p96, %p97
      %s99 = ssub.s32 %s35, %s54
      %s100 = ssub.s32 %s36, %s50
      %s101 = sor.u32 %s99, %s100
      %p102 = scmp.eq.s32.totalorder %s101, 0
      %s104 = sadd.s32 %s103, 1
      %s105 = scalar_select %p102, %s103, %s104
      %p108 = pneg %p102
      %p109 = scmp.eq.s32.totalorder %s28, 7
      %p110 = por %p108, %p109
      %p111 = scmp.ne.s32.totalorder %s103, %s106
      %p112 = scmp.eq.s32.totalorder %s28, 0
      %p113 = por %p111, %p112
      %p114 = scmp.ne.s32.totalorder %s103, %s106
      %p115 = scmp.eq.s32.totalorder %s33, 7
      %p116 = por %p114, %p115
      %p117 = scmp.ne.s32.totalorder %s106, %s107
      %p118 = scmp.eq.s32.totalorder %s33, 0
      %p119 = por %p117, %p118
      %p120 = scmp.ne.s32.totalorder %s106, %s107
      %p121 = scmp.eq.s32.totalorder %s34, 7
      %p122 = por %p120, %p121
      %p124 = scmp.ne.s32.totalorder %s107, %s123
      %p125 = scmp.eq.s32.totalorder %s34, 0
      %p126 = por %p124, %p125
      %s127 = ssub.s32 %s35, %s54
      %s128 = ssub.s32 %s36, %s50
      %s129 = sor.u32 %s127, %s128
      %p130 = scmp.eq.s32.totalorder %s129, 0
      %s132 = sadd.s32 %s131, 1
      %s133 = scalar_select %p130, %s131, %s132
      %p136 = pneg %p130
      %p137 = scmp.eq.s32.totalorder %s28, 7
      %p138 = por %p136, %p137
      %p139 = scmp.ne.s32.totalorder %s131, %s134
      %p140 = scmp.eq.s32.totalorder %s28, 0
      %p141 = por %p139, %p140
      %p142 = scmp.ne.s32.totalorder %s131, %s134
      %p143 = scmp.eq.s32.totalorder %s33, 7
      %p144 = por %p142, %p143
      %p145 = scmp.ne.s32.totalorder %s134, %s135
      %p146 = scmp.eq.s32.totalorder %s33, 0
      %p147 = por %p145, %p146
      %p148 = scmp.ne.s32.totalorder %s134, %s135
      %p149 = scmp.eq.s32.totalorder %s34, 7
      %p150 = por %p148, %p149
      %p152 = scmp.ne.s32.totalorder %s135, %s151
      %p153 = scmp.eq.s32.totalorder %s34, 0
      %p154 = por %p152, %p153
      %s155 = ssub.s32 %s35, %s54
      %s156 = ssub.s32 %s36, %s50
      %s157 = sor.u32 %s155, %s156
      %p158 = scmp.eq.s32.totalorder %s157, 0
      %s160 = sadd.s32 %s159, 1
      %s161 = scalar_select %p158, %s159, %s160
      %p164 = pneg %p158
      %p165 = scmp.eq.s32.totalorder %s28, 7
      %p166 = por %p164, %p165
      %p167 = scmp.ne.s32.totalorder %s159, %s162
      %p168 = scmp.eq.s32.totalorder %s28, 0
      %p169 = por %p167, %p168
      %p170 = scmp.ne.s32.totalorder %s159, %s162
      %p171 = scmp.eq.s32.totalorder %s33, 7
      %p172 = por %p170, %p171
      %p173 = scmp.ne.s32.totalorder %s162, %s163
      %p174 = scmp.eq.s32.totalorder %s33, 0
      %p175 = por %p173, %p174
      %p176 = scmp.ne.s32.totalorder %s162, %s163
      %p177 = scmp.eq.s32.totalorder %s34, 7
      %p178 = por %p176, %p177
      %p180 = scmp.ne.s32.totalorder %s163, %s179
      %p181 = scmp.eq.s32.totalorder %s34, 0
      %p182 = por %p180, %p181
      %p183 = scmp.le.s32.totalorder 1, %s28
      %p184 = scmp.lt.s32.totalorder %s28, 9
      %p185 = pnand %p183, %p184
      %p186 = pneg %p185
      // Predicated region
      $region9: #{tpu_custom_call.1} parent=5 // pred_check
        _
      $region10: #{tpu_custom_call.1} parent=5 // pred_check_branch
        %188 = sbr.rel (%p185) target = $region12
      $region11: #{tpu_custom_call.1} parent=5 // pred_region
        %s189 = ssub.s32 %s28, 1
      $region12: #{tpu_custom_call.1} parent=5 // pred_fallthru
        _
      %p190 = scmp.lt.s32.totalorder %s28, 8
      // Predicated region
      $region13: #{tpu_custom_call.1} parent=5 // pred_check
        %p191 = pneg %p190
      $region14: #{tpu_custom_call.1} parent=5 // pred_check_branch
        %193 = sbr.rel (%p191) target = $region16
      $region15: #{tpu_custom_call.1} parent=5 // pred_region
        // Predicated region
        $region17: #{tpu_custom_call.1} parent=15 // pred_check
          %p194 = pneg %p85
        $region18: #{tpu_custom_call.1} parent=15 // pred_check_branch
          %196 = sbr.rel (%p194) target = $region20
        $region19: #{tpu_custom_call.1} parent=15 // pred_region
          %s197 = sand.u32 %s75, 1
          %s198 = scalar_lea.sflag [#allocation7], %s197
          %s199 = sand.u32 %s75, 1
          %s200 = smul.addr %s199, 256
          %s201 = scalar_lea.vmem [#allocation6], %s200
          %s202 = smul.u32 %s35, 2
          %s203 = sadd.s32 %s202, %s36
          %s204 = sld [smem:[#allocation4 + %s203]]
          %s205 = sld [smem:[#allocation5 + %s203]]
          %s206 = ssub.s32 %s205, 1
          %p207 = scmp.lt.s32.totalorder %s37, %s206
          %s208 = scalar_select %p207, %s37, %s206
          %s209 = sadd.s32 %s204, %s208
          %s210 = smul.u32 4, %s209
          %s212 = ssub.s32 4096, 4096
          %213 = vsyncadd %s198, %s212
          %s214 = smul.addr %s35, 128
          %s215 = sadd.s32 %s210, %s214
          %s216 = smul.addr %s215, 64
          %s217 = scalar_lea.hbm %s2, %s216
          %s218 = sshll.u32 %s201, 4
          %s219 = int_to_ptr.vmem [resolvable:$true] %s218
          %224 = dma.hbm_to_vmem [thread:$0]  %s217, 4096, %s219, %s198, 512, 256, 16
        $region20: #{tpu_custom_call.1} parent=15 // pred_fallthru
          _
        // Predicated region
        $region21: #{tpu_custom_call.1} parent=15 // pred_check
          %p225 = pneg %p113
        $region22: #{tpu_custom_call.1} parent=15 // pred_check_branch
          %227 = sbr.rel (%p225) target = $region24
        $region23: #{tpu_custom_call.1} parent=15 // pred_region
          %s228 = smul.u32 2, %s36
          %p229 = scmp.lt.s32.totalorder %s35, 1
          %s230 = scalar_select %p229, %s35, 1
          %p231 = scmp.lt.s32.totalorder %s228, 3
          %s232 = scalar_select %p231, %s228, 3
          %s233 = smul.addr %s230, 4
          %s234 = sadd.s32 %s232, %s233
          %s235 = scalar_lea.vmem %s3, %s234
          %s236 = smul.u32 2, %s36
        $region24: #{tpu_custom_call.1} parent=15 // pred_fallthru
          _
        // Predicated region
        $region25: #{tpu_custom_call.1} parent=15 // pred_check
          %p237 = pneg %p141
        $region26: #{tpu_custom_call.1} parent=15 // pred_check_branch
          %239 = sbr.rel (%p237) target = $region28
        $region27: #{tpu_custom_call.1} parent=15 // pred_region
          %s240 = sand.u32 %s131, 1
          %s241 = scalar_lea.sflag [#allocation10], %s240
          %s242 = sand.u32 %s131, 1
          %s243 = smul.addr %s242, 16
          %s244 = scalar_lea.vmem [#allocation9], %s243
          %s245 = smul.u32 2, %s36
          %s247 = ssub.s32 256, 256
          %248 = vsyncadd %s241, %s247
          %s249 = smul.addr %s35, 4
          %s250 = sadd.s32 %s245, %s249
          %s251 = smul.addr %s250, 128
          %s252 = scalar_lea.hbm %s4, %s251
          %s254 = sshll.u32 %s244, 4
          %s255 = int_to_ptr.vmem [resolvable:$true] %s254
          %257 = dma.hbm_to_vmem [thread:$0]  %s252, 256, %s255, %s241
        $region28: #{tpu_custom_call.1} parent=15 // pred_fallthru
          _
      $region16: #{tpu_custom_call.1} parent=5 // pred_fallthru
        _
      %p258 = scmp.le.s32.totalorder 1, %s28
      %p259 = scmp.lt.s32.totalorder %s28, 9
      %p260 = pnand %p258, %p259
      %p261 = pneg %p260
      // Predicated region
      $region29: #{tpu_custom_call.1} parent=5 // pred_check
        _
      $region30: #{tpu_custom_call.1} parent=5 // pred_check_branch
        %263 = sbr.rel (%p260) target = $region32
      $region31: #{tpu_custom_call.1} parent=5 // pred_region
        %s264 = ssub.s32 %s28, 1
        %s265 = sand.u32 %s78, 1
        %s266 = scalar_lea.sflag [#allocation7], %s265
        %s267 = sand.u32 %s78, 1
        %s268 = smul.addr %s267, 256
        %s269 = scalar_lea.vmem [#allocation6], %s268
        // Predicated region
        $region33: #{tpu_custom_call.1} parent=31 // pred_check
          %p270 = pneg %p91
        $region34: #{tpu_custom_call.1} parent=31 // pred_check_branch
          %272 = sbr.rel (%p270) target = $region36
        $region35: #{tpu_custom_call.1} parent=31 // pred_region
          %273 = dma.done %s266, 4096
        $region36: #{tpu_custom_call.1} parent=31 // pred_fallthru
          _
        %s274 = sand.u32 %s134, 1
        %s275 = scalar_lea.sflag [#allocation10], %s274
        %s276 = sand.u32 %s134, 1
        %s277 = smul.addr %s276, 16
        %s278 = scalar_lea.vmem [#allocation9], %s277
        // Predicated region
        $region37: #{tpu_custom_call.1} parent=31 // pred_check
          %p279 = pneg %p147
        $region38: #{tpu_custom_call.1} parent=31 // pred_check_branch
          %281 = sbr.rel (%p279) target = $region40
        $region39: #{tpu_custom_call.1} parent=31 // pred_region
          %282 = dma.done %s275, 256
        $region40: #{tpu_custom_call.1} parent=31 // pred_fallthru
          _
        %s283 = sand.u32 %s78, 1
        %s284 = scalar_lea.sflag [#allocation7], %s283
        %s285 = sand.u32 %s78, 1
        %s286 = smul.addr %s285, 256
        %s287 = scalar_lea.vmem [#allocation6], %s286
        %p288 = pneg %p91
        %p289 = pneg %p88
        %s290 = smul.u32 2, %s39
        %p291 = scmp.lt.s32.totalorder %s38, 1
        %s292 = scalar_select %p291, %s38, 1
        %p293 = scmp.lt.s32.totalorder %s290, 3
        %s294 = scalar_select %p293, %s290, 3
        %s295 = smul.addr %s292, 4
        %s296 = sadd.s32 %s294, %s295
        %s297 = scalar_lea.vmem %s3, %s296
        %p298 = pneg %p119
        %p299 = pneg %p116
        %s300 = sand.u32 %s134, 1
        %s301 = scalar_lea.sflag [#allocation10], %s300
        %s302 = sand.u32 %s134, 1
        %s303 = smul.addr %s302, 16
        %s304 = scalar_lea.vmem [#allocation9], %s303
        %p305 = pneg %p147
        %p306 = pneg %p144
        %p307 = pneg %p175
        %p308 = pneg %p172
        %s309 = sand.u32 %s162, 1
        %s310 = scalar_lea.sflag [#allocation8], %s309
        %s311 = sand.u32 %s162, 1
        %s312 = smul.addr %s311, 16
        %s313 = scalar_lea.vmem [#allocation11], %s312
        %s314 = smul.u32 %s38, 2
        %s315 = sadd.s32 %s314, %s39
        %s316 = sld [smem:[#allocation4 + %s315]]
        %s317 = sld [smem:[#allocation5 + %s315]]
        %s318 = ssub.s32 %s317, 1
        %p319 = scmp.lt.s32.totalorder %s40, %s318
        %s320 = scalar_select %p319, %s40, %s318
        %s321 = sadd.s32 %s316, %s320
        %s322 = smul.u32 4, %s321
        %s323 = smul.u32 2, %s39
        %p324 = scmp.lt.s32.totalorder %s38, 1
        %s325 = scalar_select %p324, %s38, 1
        %p326 = scmp.lt.s32.totalorder %s323, 3
        %s327 = scalar_select %p326, %s323, 3
        %s328 = smul.addr %s325, 4
        %s329 = sadd.s32 %s327, %s328
        %s330 = scalar_lea.vmem %s3, %s329
        %s331 = smul.u32 2, %s39
        %s332 = smul.u32 2, %s39
        %s333 = smul.u32 2, %s39
        %s334 = smul.u32 %s38, 2
        %s335 = sadd.s32 %s334, %s39
        %p336 = scmp.eq.s32.totalorder %s40, 0
        // Predicated region
        $region41: #{tpu_custom_call.1} parent=31 // pred_check
          %p337 = pneg %p336
        $region42: #{tpu_custom_call.1} parent=31 // pred_check_branch
          %339 = sbr.rel (%p337) target = $region44
        $region43: #{tpu_custom_call.1} parent=31 // pred_region
          %340 = vst [vmem:[#allocation2] sm:$0xff] 0.0
          %341 = vst [vmem:[#allocation2 + $0x8] sm:$0xff] 0.0
        $region44: #{tpu_custom_call.1} parent=31 // pred_fallthru
          _
        %s342 = sld [smem:[#allocation5 + %s335]]
        %p343 = scmp.lt.s32.totalorder %s40, %s342
        // Predicated region
        $region45: #{tpu_custom_call.1} parent=31 // pred_check
          %p344 = pneg %p343
        $region46: #{tpu_custom_call.1} parent=31 // pred_check_branch
          %346 = sbr.rel (%p344) target = $region48
        $region47: #{tpu_custom_call.1} parent=31 // pred_region
          %s347 = sld [smem:[#allocation4 + %s335]]
          %s348 = sadd.s32 %s347, %s40
          %s349 = smul.u32 %s348, 512
          %v350 = vld [vmem:[%s330] sm:$0x3]
          %v351 = vstv %s349
          %v352 = vsub.s32 %v350, %v351
          %v353 = vlaneseq
          %v354 = vshrl.u32 %v353, 7
          %v355 = vadd.s32 %v354, 8
          %v356 = vadd.s32 %v354, 16
          %v357 = vadd.s32 %v354, 24
          %v358 = vadd.s32 %v354, 32
          %v359 = vadd.s32 %v354, 40
          %v360 = vadd.s32 %v354, 48
          %v361 = vadd.s32 %v354, 56
          %v362 = vadd.s32 %v354, 64
          %v363 = vadd.s32 %v354, 72
          %v364 = vadd.s32 %v354, 80
          %v365 = vadd.s32 %v354, 88
          %v366 = vadd.s32 %v354, 96
          %v367 = vadd.s32 %v354, 104
          %v368 = vadd.s32 %v354, 112
          %v369 = vadd.s32 %v354, 120
          %v370 = vadd.s32 %v354, 128
          %v371 = vadd.s32 %v354, 136
          %v372 = vadd.s32 %v354, 144
          %v373 = vadd.s32 %v354, 152
          %v374 = vadd.s32 %v354, 160
          %v375 = vadd.s32 %v354, 168
          %v376 = vadd.s32 %v354, 176
          %v377 = vadd.s32 %v354, 184
          %v378 = vadd.s32 %v354, 192
          %v379 = vadd.s32 %v354, 200
          %v380 = vadd.s32 %v354, 208
          %v381 = vadd.s32 %v354, 216
          %v382 = vadd.s32 %v354, 224
          %v383 = vadd.s32 %v354, 232
          %v384 = vadd.s32 %v354, 240
          %v385 = vadd.s32 %v354, 248
          %v386 = vadd.s32 %v354, 256
          %v387 = vadd.s32 %v354, 264
          %v388 = vadd.s32 %v354, 272
          %v389 = vadd.s32 %v354, 280
          %v390 = vadd.s32 %v354, 288
          %v391 = vadd.s32 %v354, 296
          %v392 = vadd.s32 %v354, 304
          %v393 = vadd.s32 %v354, 312
          %v394 = vadd.s32 %v354, 320
          %v395 = vadd.s32 %v354, 328
          %v396 = vadd.s32 %v354, 336
          %v397 = vadd.s32 %v354, 344
          %v398 = vadd.s32 %v354, 352
          %v399 = vadd.s32 %v354, 360
          %v400 = vadd.s32 %v354, 368
          %v401 = vadd.s32 %v354, 376
          %v402 = vadd.s32 %v354, 384
          %v403 = vadd.s32 %v354, 392
          %v404 = vadd.s32 %v354, 400
          %v405 = vadd.s32 %v354, 408
          %v406 = vadd.s32 %v354, 416
          %v407 = vadd.s32 %v354, 424
          %v408 = vadd.s32 %v354, 432
          %v409 = vadd.s32 %v354, 440
          %v410 = vadd.s32 %v354, 448
          %v411 = vadd.s32 %v354, 456
          %v412 = vadd.s32 %v354, 464
          %v413 = vadd.s32 %v354, 472
          %v414 = vadd.s32 %v354, 480
          %v415 = vadd.s32 %v354, 488
          %v416 = vadd.s32 %v354, 496
          %v417 = vadd.s32 %v354, 504
          %v418 = vlaneseq
          %v419 = vshrl.u32 %v418, 7
          %v420 = vsub.s32 0, %v419
          %v421 = vrot.slane %v352, %v420
          %v422 = vlaneseq
          %v423 = vshrl.u32 %v422, 7
          %v424 = vsub.s32 1, %v423
          %v425 = vrot.slane %v352, %v424
          %vm426 = vcmp.eq.s32.totalorder %v354, %v421
          %vm427 = vcmp.eq.s32.totalorder %v354, %v425
          %vm428 = vcmp.eq.s32.totalorder %v355, %v421
          %vm429 = vcmp.eq.s32.totalorder %v355, %v425
          %vm430 = vcmp.eq.s32.totalorder %v356, %v421
          %vm431 = vcmp.eq.s32.totalorder %v356, %v425
          %vm432 = vcmp.eq.s32.totalorder %v357, %v421
          %vm433 = vcmp.eq.s32.totalorder %v357, %v425
          %vm434 = vcmp.eq.s32.totalorder %v358, %v421
          %vm435 = vcmp.eq.s32.totalorder %v358, %v425
          %vm436 = vcmp.eq.s32.totalorder %v359, %v421
          %vm437 = vcmp.eq.s32.totalorder %v359, %v425
          %vm438 = vcmp.eq.s32.totalorder %v360, %v421
          %vm439 = vcmp.eq.s32.totalorder %v360, %v425
          %vm440 = vcmp.eq.s32.totalorder %v361, %v421
          %vm441 = vcmp.eq.s32.totalorder %v361, %v425
          %vm442 = vcmp.eq.s32.totalorder %v362, %v421
          %vm443 = vcmp.eq.s32.totalorder %v362, %v425
          %vm444 = vcmp.eq.s32.totalorder %v363, %v421
          %vm445 = vcmp.eq.s32.totalorder %v363, %v425
          %vm446 = vcmp.eq.s32.totalorder %v364, %v421
          %vm447 = vcmp.eq.s32.totalorder %v364, %v425
          %vm448 = vcmp.eq.s32.totalorder %v365, %v421
          %vm449 = vcmp.eq.s32.totalorder %v365, %v425
          %vm450 = vcmp.eq.s32.totalorder %v366, %v421
          %vm451 = vcmp.eq.s32.totalorder %v366, %v425
          %vm452 = vcmp.eq.s32.totalorder %v367, %v421
          %vm453 = vcmp.eq.s32.totalorder %v367, %v425
          %vm454 = vcmp.eq.s32.totalorder %v368, %v421
          %vm455 = vcmp.eq.s32.totalorder %v368, %v425
          %vm456 = vcmp.eq.s32.totalorder %v369, %v421
          %vm457 = vcmp.eq.s32.totalorder %v369, %v425
          %vm458 = vcmp.eq.s32.totalorder %v370, %v421
          %vm459 = vcmp.eq.s32.totalorder %v370, %v425
          %vm460 = vcmp.eq.s32.totalorder %v371, %v421
          %vm461 = vcmp.eq.s32.totalorder %v371, %v425
          %vm462 = vcmp.eq.s32.totalorder %v372, %v421
          %vm463 = vcmp.eq.s32.totalorder %v372, %v425
          %vm464 = vcmp.eq.s32.totalorder %v373, %v421
          %vm465 = vcmp.eq.s32.totalorder %v373, %v425
          %vm466 = vcmp.eq.s32.totalorder %v374, %v421
          %vm467 = vcmp.eq.s32.totalorder %v374, %v425
          %vm468 = vcmp.eq.s32.totalorder %v375, %v421
          %vm469 = vcmp.eq.s32.totalorder %v375, %v425
          %vm470 = vcmp.eq.s32.totalorder %v376, %v421
          %vm471 = vcmp.eq.s32.totalorder %v376, %v425
          %vm472 = vcmp.eq.s32.totalorder %v377, %v421
          %vm473 = vcmp.eq.s32.totalorder %v377, %v425
          %vm474 = vcmp.eq.s32.totalorder %v378, %v421
          %vm475 = vcmp.eq.s32.totalorder %v378, %v425
          %vm476 = vcmp.eq.s32.totalorder %v379, %v421
          %vm477 = vcmp.eq.s32.totalorder %v379, %v425
          %vm478 = vcmp.eq.s32.totalorder %v380, %v421
          %vm479 = vcmp.eq.s32.totalorder %v380, %v425
          %vm480 = vcmp.eq.s32.totalorder %v381, %v421
          %vm481 = vcmp.eq.s32.totalorder %v381, %v425
          %vm482 = vcmp.eq.s32.totalorder %v382, %v421
          %vm483 = vcmp.eq.s32.totalorder %v382, %v425
          %vm484 = vcmp.eq.s32.totalorder %v383, %v421
          %vm485 = vcmp.eq.s32.totalorder %v383, %v425
          %vm486 = vcmp.eq.s32.totalorder %v384, %v421
          %vm487 = vcmp.eq.s32.totalorder %v384, %v425
          %vm488 = vcmp.eq.s32.totalorder %v385, %v421
          %vm489 = vcmp.eq.s32.totalorder %v385, %v425
          %vm490 = vcmp.eq.s32.totalorder %v386, %v421
          %vm491 = vcmp.eq.s32.totalorder %v386, %v425
          %vm492 = vcmp.eq.s32.totalorder %v387, %v421
          %vm493 = vcmp.eq.s32.totalorder %v387, %v425
          %vm494 = vcmp.eq.s32.totalorder %v388, %v421
          %vm495 = vcmp.eq.s32.totalorder %v388, %v425
          %vm496 = vcmp.eq.s32.totalorder %v389, %v421
          %vm497 = vcmp.eq.s32.totalorder %v389, %v425
          %vm498 = vcmp.eq.s32.totalorder %v390, %v421
          %vm499 = vcmp.eq.s32.totalorder %v390, %v425
          %vm500 = vcmp.eq.s32.totalorder %v391, %v421
          %vm501 = vcmp.eq.s32.totalorder %v391, %v425
          %vm502 = vcmp.eq.s32.totalorder %v392, %v421
          %vm503 = vcmp.eq.s32.totalorder %v392, %v425
          %vm504 = vcmp.eq.s32.totalorder %v393, %v421
          %vm505 = vcmp.eq.s32.totalorder %v393, %v425
          %vm506 = vcmp.eq.s32.totalorder %v394, %v421
          %vm507 = vcmp.eq.s32.totalorder %v394, %v425
          %vm508 = vcmp.eq.s32.totalorder %v395, %v421
          %vm509 = vcmp.eq.s32.totalorder %v395, %v425
          %vm510 = vcmp.eq.s32.totalorder %v396, %v421
          %vm511 = vcmp.eq.s32.totalorder %v396, %v425
          %vm512 = vcmp.eq.s32.totalorder %v397, %v421
          %vm513 = vcmp.eq.s32.totalorder %v397, %v425
          %vm514 = vcmp.eq.s32.totalorder %v398, %v421
          %vm515 = vcmp.eq.s32.totalorder %v398, %v425
          %vm516 = vcmp.eq.s32.totalorder %v399, %v421
          %vm517 = vcmp.eq.s32.totalorder %v399, %v425
          %vm518 = vcmp.eq.s32.totalorder %v400, %v421
          %vm519 = vcmp.eq.s32.totalorder %v400, %v425
          %vm520 = vcmp.eq.s32.totalorder %v401, %v421
          %vm521 = vcmp.eq.s32.totalorder %v401, %v425
          %vm522 = vcmp.eq.s32.totalorder %v402, %v421
          %vm523 = vcmp.eq.s32.totalorder %v402, %v425
          %vm524 = vcmp.eq.s32.totalorder %v403, %v421
          %vm525 = vcmp.eq.s32.totalorder %v403, %v425
          %vm526 = vcmp.eq.s32.totalorder %v404, %v421
          %vm527 = vcmp.eq.s32.totalorder %v404, %v425
          %vm528 = vcmp.eq.s32.totalorder %v405, %v421
          %vm529 = vcmp.eq.s32.totalorder %v405, %v425
          %vm530 = vcmp.eq.s32.totalorder %v406, %v421
          %vm531 = vcmp.eq.s32.totalorder %v406, %v425
          %vm532 = vcmp.eq.s32.totalorder %v407, %v421
          %vm533 = vcmp.eq.s32.totalorder %v407, %v425
          %vm534 = vcmp.eq.s32.totalorder %v408, %v421
          %vm535 = vcmp.eq.s32.totalorder %v408, %v425
          %vm536 = vcmp.eq.s32.totalorder %v409, %v421
          %vm537 = vcmp.eq.s32.totalorder %v409, %v425
          %vm538 = vcmp.eq.s32.totalorder %v410, %v421
          %vm539 = vcmp.eq.s32.totalorder %v410, %v425
          %vm540 = vcmp.eq.s32.totalorder %v411, %v421
          %vm541 = vcmp.eq.s32.totalorder %v411, %v425
          %vm542 = vcmp.eq.s32.totalorder %v412, %v421
          %vm543 = vcmp.eq.s32.totalorder %v412, %v425
          %vm544 = vcmp.eq.s32.totalorder %v413, %v421
          %vm545 = vcmp.eq.s32.totalorder %v413, %v425
          %vm546 = vcmp.eq.s32.totalorder %v414, %v421
          %vm547 = vcmp.eq.s32.totalorder %v414, %v425
          %vm548 = vcmp.eq.s32.totalorder %v415, %v421
          %vm549 = vcmp.eq.s32.totalorder %v415, %v425
          %vm550 = vcmp.eq.s32.totalorder %v416, %v421
          %vm551 = vcmp.eq.s32.totalorder %v416, %v425
          %vm552 = vcmp.eq.s32.totalorder %v417, %v421
          %vm553 = vcmp.eq.s32.totalorder %v417, %v425
          %v554 = vsel %vm426, 1, 0
          %v555 = vsel %vm427, 1, 0
          %v556 = vsel %vm428, 1, 0
          %v557 = vsel %vm429, 1, 0
          %v558 = vsel %vm430, 1, 0
          %v559 = vsel %vm431, 1, 0
          %v560 = vsel %vm432, 1, 0
          %v561 = vsel %vm433, 1, 0
          %v562 = vsel %vm434, 1, 0
          %v563 = vsel %vm435, 1, 0
          %v564 = vsel %vm436, 1, 0
          %v565 = vsel %vm437, 1, 0
          %v566 = vsel %vm438, 1, 0
          %v567 = vsel %vm439, 1, 0
          %v568 = vsel %vm440, 1, 0
          %v569 = vsel %vm441, 1, 0
          %v570 = vsel %vm442, 1, 0
          %v571 = vsel %vm443, 1, 0
          %v572 = vsel %vm444, 1, 0
          %v573 = vsel %vm445, 1, 0
          %v574 = vsel %vm446, 1, 0
          %v575 = vsel %vm447, 1, 0
          %v576 = vsel %vm448, 1, 0
          %v577 = vsel %vm449, 1, 0
          %v578 = vsel %vm450, 1, 0
          %v579 = vsel %vm451, 1, 0
          %v580 = vsel %vm452, 1, 0
          %v581 = vsel %vm453, 1, 0
          %v582 = vsel %vm454, 1, 0
          %v583 = vsel %vm455, 1, 0
          %v584 = vsel %vm456, 1, 0
          %v585 = vsel %vm457, 1, 0
          %v586 = vsel %vm458, 1, 0
          %v587 = vsel %vm459, 1, 0
          %v588 = vsel %vm460, 1, 0
          %v589 = vsel %vm461, 1, 0
          %v590 = vsel %vm462, 1, 0
          %v591 = vsel %vm463, 1, 0
          %v592 = vsel %vm464, 1, 0
          %v593 = vsel %vm465, 1, 0
          %v594 = vsel %vm466, 1, 0
          %v595 = vsel %vm467, 1, 0
          %v596 = vsel %vm468, 1, 0
          %v597 = vsel %vm469, 1, 0
          %v598 = vsel %vm470, 1, 0
          %v599 = vsel %vm471, 1, 0
          %v600 = vsel %vm472, 1, 0
          %v601 = vsel %vm473, 1, 0
          %v602 = vsel %vm474, 1, 0
          %v603 = vsel %vm475, 1, 0
          %v604 = vsel %vm476, 1, 0
          %v605 = vsel %vm477, 1, 0
          %v606 = vsel %vm478, 1, 0
          %v607 = vsel %vm479, 1, 0
          %v608 = vsel %vm480, 1, 0
          %v609 = vsel %vm481, 1, 0
          %v610 = vsel %vm482, 1, 0
          %v611 = vsel %vm483, 1, 0
          %v612 = vsel %vm484, 1, 0
          %v613 = vsel %vm485, 1, 0
          %v614 = vsel %vm486, 1, 0
          %v615 = vsel %vm487, 1, 0
          %v616 = vsel %vm488, 1, 0
          %v617 = vsel %vm489, 1, 0
          %v618 = vsel %vm490, 1, 0
          %v619 = vsel %vm491, 1, 0
          %v620 = vsel %vm492, 1, 0
          %v621 = vsel %vm493, 1, 0
          %v622 = vsel %vm494, 1, 0
          %v623 = vsel %vm495, 1, 0
          %v624 = vsel %vm496, 1, 0
          %v625 = vsel %vm497, 1, 0
          %v626 = vsel %vm498, 1, 0
          %v627 = vsel %vm499, 1, 0
          %v628 = vsel %vm500, 1, 0
          %v629 = vsel %vm501, 1, 0
          %v630 = vsel %vm502, 1, 0
          %v631 = vsel %vm503, 1, 0
          %v632 = vsel %vm504, 1, 0
          %v633 = vsel %vm505, 1, 0
          %v634 = vsel %vm506, 1, 0
          %v635 = vsel %vm507, 1, 0
          %v636 = vsel %vm508, 1, 0
          %v637 = vsel %vm509, 1, 0
          %v638 = vsel %vm510, 1, 0
          %v639 = vsel %vm511, 1, 0
          %v640 = vsel %vm512, 1, 0
          %v641 = vsel %vm513, 1, 0
          %v642 = vsel %vm514, 1, 0
          %v643 = vsel %vm515, 1, 0
          %v644 = vsel %vm516, 1, 0
          %v645 = vsel %vm517, 1, 0
          %v646 = vsel %vm518, 1, 0
          %v647 = vsel %vm519, 1, 0
          %v648 = vsel %vm520, 1, 0
          %v649 = vsel %vm521, 1, 0
          %v650 = vsel %vm522, 1, 0
          %v651 = vsel %vm523, 1, 0
          %v652 = vsel %vm524, 1, 0
          %v653 = vsel %vm525, 1, 0
          %v654 = vsel %vm526, 1, 0
          %v655 = vsel %vm527, 1, 0
          %v656 = vsel %vm528, 1, 0
          %v657 = vsel %vm529, 1, 0
          %v658 = vsel %vm530, 1, 0
          %v659 = vsel %vm531, 1, 0
          %v660 = vsel %vm532, 1, 0
          %v661 = vsel %vm533, 1, 0
          %v662 = vsel %vm534, 1, 0
          %v663 = vsel %vm535, 1, 0
          %v664 = vsel %vm536, 1, 0
          %v665 = vsel %vm537, 1, 0
          %v666 = vsel %vm538, 1, 0
          %v667 = vsel %vm539, 1, 0
          %v668 = vsel %vm540, 1, 0
          %v669 = vsel %vm541, 1, 0
          %v670 = vsel %vm542, 1, 0
          %v671 = vsel %vm543, 1, 0
          %v672 = vsel %vm544, 1, 0
          %v673 = vsel %vm545, 1, 0
          %v674 = vsel %vm546, 1, 0
          %v675 = vsel %vm547, 1, 0
          %v676 = vsel %vm548, 1, 0
          %v677 = vsel %vm549, 1, 0
          %v678 = vsel %vm550, 1, 0
          %v679 = vsel %vm551, 1, 0
          %v680 = vsel %vm552, 1, 0
          %v681 = vsel %vm553, 1, 0
          %v682 = vcvt.s32.f32 %v554
          %v683 = vcvt.s32.f32 %v555
          %v684 = vcvt.s32.f32 %v556
          %v685 = vcvt.s32.f32 %v557
          %v686 = vcvt.s32.f32 %v558
          %v687 = vcvt.s32.f32 %v559
          %v688 = vcvt.s32.f32 %v560
          %v689 = vcvt.s32.f32 %v561
          %v690 = vcvt.s32.f32 %v562
          %v691 = vcvt.s32.f32 %v563
          %v692 = vcvt.s32.f32 %v564
          %v693 = vcvt.s32.f32 %v565
          %v694 = vcvt.s32.f32 %v566
          %v695 = vcvt.s32.f32 %v567
          %v696 = vcvt.s32.f32 %v568
          %v697 = vcvt.s32.f32 %v569
          %v698 = vcvt.s32.f32 %v570
          %v699 = vcvt.s32.f32 %v571
          %v700 = vcvt.s32.f32 %v572
          %v701 = vcvt.s32.f32 %v573
          %v702 = vcvt.s32.f32 %v574
          %v703 = vcvt.s32.f32 %v575
          %v704 = vcvt.s32.f32 %v576
          %v705 = vcvt.s32.f32 %v577
          %v706 = vcvt.s32.f32 %v578
          %v707 = vcvt.s32.f32 %v579
          %v708 = vcvt.s32.f32 %v580
          %v709 = vcvt.s32.f32 %v581
          %v710 = vcvt.s32.f32 %v582
          %v711 = vcvt.s32.f32 %v583
          %v712 = vcvt.s32.f32 %v584
          %v713 = vcvt.s32.f32 %v585
          %v714 = vcvt.s32.f32 %v586
          %v715 = vcvt.s32.f32 %v587
          %v716 = vcvt.s32.f32 %v588
          %v717 = vcvt.s32.f32 %v589
          %v718 = vcvt.s32.f32 %v590
          %v719 = vcvt.s32.f32 %v591
          %v720 = vcvt.s32.f32 %v592
          %v721 = vcvt.s32.f32 %v593
          %v722 = vcvt.s32.f32 %v594
          %v723 = vcvt.s32.f32 %v595
          %v724 = vcvt.s32.f32 %v596
          %v725 = vcvt.s32.f32 %v597
          %v726 = vcvt.s32.f32 %v598
          %v727 = vcvt.s32.f32 %v599
          %v728 = vcvt.s32.f32 %v600
          %v729 = vcvt.s32.f32 %v601
          %v730 = vcvt.s32.f32 %v602
          %v731 = vcvt.s32.f32 %v603
          %v732 = vcvt.s32.f32 %v604
          %v733 = vcvt.s32.f32 %v605
          %v734 = vcvt.s32.f32 %v606
          %v735 = vcvt.s32.f32 %v607
          %v736 = vcvt.s32.f32 %v608
          %v737 = vcvt.s32.f32 %v609
          %v738 = vcvt.s32.f32 %v610
          %v739 = vcvt.s32.f32 %v611
          %v740 = vcvt.s32.f32 %v612
          %v741 = vcvt.s32.f32 %v613
          %v742 = vcvt.s32.f32 %v614
          %v743 = vcvt.s32.f32 %v615
          %v744 = vcvt.s32.f32 %v616
          %v745 = vcvt.s32.f32 %v617
          %v746 = vcvt.s32.f32 %v618
          %v747 = vcvt.s32.f32 %v619
          %v748 = vcvt.s32.f32 %v620
          %v749 = vcvt.s32.f32 %v621
          %v750 = vcvt.s32.f32 %v622
          %v751 = vcvt.s32.f32 %v623
          %v752 = vcvt.s32.f32 %v624
          %v753 = vcvt.s32.f32 %v625
          %v754 = vcvt.s32.f32 %v626
          %v755 = vcvt.s32.f32 %v627
          %v756 = vcvt.s32.f32 %v628
          %v757 = vcvt.s32.f32 %v629
          %v758 = vcvt.s32.f32 %v630
          %v759 = vcvt.s32.f32 %v631
          %v760 = vcvt.s32.f32 %v632
          %v761 = vcvt.s32.f32 %v633
          %v762 = vcvt.s32.f32 %v634
          %v763 = vcvt.s32.f32 %v635
          %v764 = vcvt.s32.f32 %v636
          %v765 = vcvt.s32.f32 %v637
          %v766 = vcvt.s32.f32 %v638
          %v767 = vcvt.s32.f32 %v639
          %v768 = vcvt.s32.f32 %v640
          %v769 = vcvt.s32.f32 %v641
          %v770 = vcvt.s32.f32 %v642
          %v771 = vcvt.s32.f32 %v643
          %v772 = vcvt.s32.f32 %v644
          %v773 = vcvt.s32.f32 %v645
          %v774 = vcvt.s32.f32 %v646
          %v775 = vcvt.s32.f32 %v647
          %v776 = vcvt.s32.f32 %v648
          %v777 = vcvt.s32.f32 %v649
          %v778 = vcvt.s32.f32 %v650
          %v779 = vcvt.s32.f32 %v651
          %v780 = vcvt.s32.f32 %v652
          %v781 = vcvt.s32.f32 %v653
          %v782 = vcvt.s32.f32 %v654
          %v783 = vcvt.s32.f32 %v655
          %v784 = vcvt.s32.f32 %v656
          %v785 = vcvt.s32.f32 %v657
          %v786 = vcvt.s32.f32 %v658
          %v787 = vcvt.s32.f32 %v659
          %v788 = vcvt.s32.f32 %v660
          %v789 = vcvt.s32.f32 %v661
          %v790 = vcvt.s32.f32 %v662
          %v791 = vcvt.s32.f32 %v663
          %v792 = vcvt.s32.f32 %v664
          %v793 = vcvt.s32.f32 %v665
          %v794 = vcvt.s32.f32 %v666
          %v795 = vcvt.s32.f32 %v667
          %v796 = vcvt.s32.f32 %v668
          %v797 = vcvt.s32.f32 %v669
          %v798 = vcvt.s32.f32 %v670
          %v799 = vcvt.s32.f32 %v671
          %v800 = vcvt.s32.f32 %v672
          %v801 = vcvt.s32.f32 %v673
          %v802 = vcvt.s32.f32 %v674
          %v803 = vcvt.s32.f32 %v675
          %v804 = vcvt.s32.f32 %v676
          %v805 = vcvt.s32.f32 %v677
          %v806 = vcvt.s32.f32 %v678
          %v807 = vcvt.s32.f32 %v679
          %v808 = vcvt.s32.f32 %v680
          %v809 = vcvt.s32.f32 %v681
          %v810 = vpack.c.bf16 %v684, %v682
          %v811 = vpack.c.bf16 %v685, %v683
          %v812 = vpack.c.bf16 %v688, %v686
          %v813 = vpack.c.bf16 %v689, %v687
          %v814 = vpack.c.bf16 %v692, %v690
          %v815 = vpack.c.bf16 %v693, %v691
          %v816 = vpack.c.bf16 %v696, %v694
          %v817 = vpack.c.bf16 %v697, %v695
          %v818 = vpack.c.bf16 %v700, %v698
          %v819 = vpack.c.bf16 %v701, %v699
          %v820 = vpack.c.bf16 %v704, %v702
          %v821 = vpack.c.bf16 %v705, %v703
          %v822 = vpack.c.bf16 %v708, %v706
          %v823 = vpack.c.bf16 %v709, %v707
          %v824 = vpack.c.bf16 %v712, %v710
          %v825 = vpack.c.bf16 %v713, %v711
          %v826 = vpack.c.bf16 %v716, %v714
          %v827 = vpack.c.bf16 %v717, %v715
          %v828 = vpack.c.bf16 %v720, %v718
          %v829 = vpack.c.bf16 %v721, %v719
          %v830 = vpack.c.bf16 %v724, %v722
          %v831 = vpack.c.bf16 %v725, %v723
          %v832 = vpack.c.bf16 %v728, %v726
          %v833 = vpack.c.bf16 %v729, %v727
          %v834 = vpack.c.bf16 %v732, %v730
          %v835 = vpack.c.bf16 %v733, %v731
          %v836 = vpack.c.bf16 %v736, %v734
          %v837 = vpack.c.bf16 %v737, %v735
          %v838 = vpack.c.bf16 %v740, %v738
          %v839 = vpack.c.bf16 %v741, %v739
          %v840 = vpack.c.bf16 %v744, %v742
          %v841 = vpack.c.bf16 %v745, %v743
          %v842 = vpack.c.bf16 %v748, %v746
          %v843 = vpack.c.bf16 %v749, %v747
          %v844 = vpack.c.bf16 %v752, %v750
          %v845 = vpack.c.bf16 %v753, %v751
          %v846 = vpack.c.bf16 %v756, %v754
          %v847 = vpack.c.bf16 %v757, %v755
          %v848 = vpack.c.bf16 %v760, %v758
          %v849 = vpack.c.bf16 %v761, %v759
          %v850 = vpack.c.bf16 %v764, %v762
          %v851 = vpack.c.bf16 %v765, %v763
          %v852 = vpack.c.bf16 %v768, %v766
          %v853 = vpack.c.bf16 %v769, %v767
          %v854 = vpack.c.bf16 %v772, %v770
          %v855 = vpack.c.bf16 %v773, %v771
          %v856 = vpack.c.bf16 %v776, %v774
          %v857 = vpack.c.bf16 %v777, %v775
          %v858 = vpack.c.bf16 %v780, %v778
          %v859 = vpack.c.bf16 %v781, %v779
          %v860 = vpack.c.bf16 %v784, %v782
          %v861 = vpack.c.bf16 %v785, %v783
          %v862 = vpack.c.bf16 %v788, %v786
          %v863 = vpack.c.bf16 %v789, %v787
          %v864 = vpack.c.bf16 %v792, %v790
          %v865 = vpack.c.bf16 %v793, %v791
          %v866 = vpack.c.bf16 %v796, %v794
          %v867 = vpack.c.bf16 %v797, %v795
          %v868 = vpack.c.bf16 %v800, %v798
          %v869 = vpack.c.bf16 %v801, %v799
          %v870 = vpack.c.bf16 %v804, %v802
          %v871 = vpack.c.bf16 %v805, %v803
          %v872 = vpack.c.bf16 %v808, %v806
          %v873 = vpack.c.bf16 %v809, %v807
          %v874 = vld [vmem:[%s269] sm:$0xff]
          %v875 = vld [vmem:[%s269 + $0x8] sm:$0xff]
          %v876 = vld [vmem:[%s269 + $0x10] sm:$0xff]
          %v877 = vld [vmem:[%s269 + $0x18] sm:$0xff]
          %v878 = vld [vmem:[%s269 + $0x20] sm:$0xff]
          %v879 = vld [vmem:[%s269 + $0x28] sm:$0xff]
          %v880 = vld [vmem:[%s269 + $0x30] sm:$0xff]
          %v881 = vld [vmem:[%s269 + $0x38] sm:$0xff]
          %v882 = vld [vmem:[%s269 + $0x40] sm:$0xff]
          %v883 = vld [vmem:[%s269 + $0x48] sm:$0xff]
          %v884 = vld [vmem:[%s269 + $0x50] sm:$0xff]
          %v885 = vld [vmem:[%s269 + $0x58] sm:$0xff]
          %v886 = vld [vmem:[%s269 + $0x60] sm:$0xff]
          %v887 = vld [vmem:[%s269 + $0x68] sm:$0xff]
          %v888 = vld [vmem:[%s269 + $0x70] sm:$0xff]
          %v889 = vld [vmem:[%s269 + $0x78] sm:$0xff]
          %v890 = vld [vmem:[%s269 + $0x80] sm:$0xff]
          %v891 = vld [vmem:[%s269 + $0x88] sm:$0xff]
          %v892 = vld [vmem:[%s269 + $0x90] sm:$0xff]
          %v893 = vld [vmem:[%s269 + $0x98] sm:$0xff]
          %v894 = vld [vmem:[%s269 + $0xa0] sm:$0xff]
          %v895 = vld [vmem:[%s269 + $0xa8] sm:$0xff]
          %v896 = vld [vmem:[%s269 + $0xb0] sm:$0xff]
          %v897 = vld [vmem:[%s269 + $0xb8] sm:$0xff]
          %v898 = vld [vmem:[%s269 + $0xc0] sm:$0xff]
          %v899 = vld [vmem:[%s269 + $0xc8] sm:$0xff]
          %v900 = vld [vmem:[%s269 + $0xd0] sm:$0xff]
          %v901 = vld [vmem:[%s269 + $0xd8] sm:$0xff]
          %v902 = vld [vmem:[%s269 + $0xe0] sm:$0xff]
          %v903 = vld [vmem:[%s269 + $0xe8] sm:$0xff]
          %v904 = vld [vmem:[%s269 + $0xf0] sm:$0xff]
          %v905 = vld [vmem:[%s269 + $0xf8] sm:$0xff]
          %v938 = vunpack.c.l.b16 %v874
          %v939 = vunpack.c.h.b16 %v874
          %v940 = vunpack.c.l.b16 %v875
          %v941 = vunpack.c.h.b16 %v875
          %v942 = vunpack.c.l.b16 %v876
          %v943 = vunpack.c.h.b16 %v876
          %v944 = vunpack.c.l.b16 %v877
          %v945 = vunpack.c.h.b16 %v877
          %v946 = vunpack.c.l.b16 %v878
          %v947 = vunpack.c.h.b16 %v878
          %v948 = vunpack.c.l.b16 %v879
          %v949 = vunpack.c.h.b16 %v879
          %v950 = vunpack.c.l.b16 %v880
          %v951 = vunpack.c.h.b16 %v880
          %v952 = vunpack.c.l.b16 %v881
          %v953 = vunpack.c.h.b16 %v881
          %v954 = vunpack.c.l.b16 %v882
          %v955 = vunpack.c.h.b16 %v882
          %v956 = vunpack.c.l.b16 %v883
          %v957 = vunpack.c.h.b16 %v883
          %v958 = vunpack.c.l.b16 %v884
          %v959 = vunpack.c.h.b16 %v884
          %v960 = vunpack.c.l.b16 %v885
          %v961 = vunpack.c.h.b16 %v885
          %v962 = vunpack.c.l.b16 %v886
          %v963 = vunpack.c.h.b16 %v886
          %v964 = vunpack.c.l.b16 %v887
          %v965 = vunpack.c.h.b16 %v887
          %v966 = vunpack.c.l.b16 %v888
          %v967 = vunpack.c.h.b16 %v888
          %v968 = vunpack.c.l.b16 %v889
          %v969 = vunpack.c.h.b16 %v889
          %v970 = vunpack.c.l.b16 %v890
          %v971 = vunpack.c.h.b16 %v890
          %v972 = vunpack.c.l.b16 %v891
          %v973 = vunpack.c.h.b16 %v891
          %v974 = vunpack.c.l.b16 %v892
          %v975 = vunpack.c.h.b16 %v892
          %v976 = vunpack.c.l.b16 %v893
          %v977 = vunpack.c.h.b16 %v893
          %v978 = vunpack.c.l.b16 %v894
          %v979 = vunpack.c.h.b16 %v894
          %v980 = vunpack.c.l.b16 %v895
          %v981 = vunpack.c.h.b16 %v895
          %v982 = vunpack.c.l.b16 %v896
          %v983 = vunpack.c.h.b16 %v896
          %v984 = vunpack.c.l.b16 %v897
          %v985 = vunpack.c.h.b16 %v897
          %v986 = vunpack.c.l.b16 %v898
          %v987 = vunpack.c.h.b16 %v898
          %v988 = vunpack.c.l.b16 %v899
          %v989 = vunpack.c.h.b16 %v899
          %v990 = vunpack.c.l.b16 %v900
          %v991 = vunpack.c.h.b16 %v900
          %v992 = vunpack.c.l.b16 %v901
          %v993 = vunpack.c.h.b16 %v901
          %v994 = vunpack.c.l.b16 %v902
          %v995 = vunpack.c.h.b16 %v902
          %v996 = vunpack.c.l.b16 %v903
          %v997 = vunpack.c.h.b16 %v903
          %v998 = vunpack.c.l.b16 %v904
          %v999 = vunpack.c.h.b16 %v904
          %v1000 = vunpack.c.l.b16 %v905
          %v1001 = vunpack.c.h.b16 %v905
          %v1002 = vpack.c.b16 %v942, %v938
          %v1003 = vpack.c.b16 %v943, %v939
          %v1004 = vpack.c.b16 %v944, %v940
          %v1005 = vpack.c.b16 %v945, %v941
          %v1006 = vpack.c.b16 %v950, %v946
          %v1007 = vpack.c.b16 %v951, %v947
          %v1008 = vpack.c.b16 %v952, %v948
          %v1009 = vpack.c.b16 %v953, %v949
          %v1010 = vpack.c.b16 %v958, %v954
          %v1011 = vpack.c.b16 %v959, %v955
          %v1012 = vpack.c.b16 %v960, %v956
          %v1013 = vpack.c.b16 %v961, %v957
          %v1014 = vpack.c.b16 %v966, %v962
          %v1015 = vpack.c.b16 %v967, %v963
          %v1016 = vpack.c.b16 %v968, %v964
          %v1017 = vpack.c.b16 %v969, %v965
          %v1018 = vpack.c.b16 %v974, %v970
          %v1019 = vpack.c.b16 %v975, %v971
          %v1020 = vpack.c.b16 %v976, %v972
          %v1021 = vpack.c.b16 %v977, %v973
          %v1022 = vpack.c.b16 %v982, %v978
          %v1023 = vpack.c.b16 %v983, %v979
          %v1024 = vpack.c.b16 %v984, %v980
          %v1025 = vpack.c.b16 %v985, %v981
          %v1026 = vpack.c.b16 %v990, %v986
          %v1027 = vpack.c.b16 %v991, %v987
          %v1028 = vpack.c.b16 %v992, %v988
          %v1029 = vpack.c.b16 %v993, %v989
          %v1030 = vpack.c.b16 %v998, %v994
          %v1031 = vpack.c.b16 %v999, %v995
          %v1032 = vpack.c.b16 %v1000, %v996
          %v1033 = vpack.c.b16 %v1001, %v997
          %1066 = vmatprep.subr.bf16.mxu0 %v811
          %1067 = vmatpush1.bf16.msra.mxu0 %v810
          %1068 = vmatprep.subr.bf16.mxu0 %v813
          %1069 = vmatpush1.bf16.msra.mxu0 %v812
          %1070 = vmatprep.subr.bf16.mxu0 %v815
          %1071 = vmatpush1.bf16.msra.mxu0 %v814
          %1072 = vmatprep.subr.bf16.mxu0 %v817
          %1073 = vmatpush1.bf16.msra.mxu0 %v816
          %1074 = vmatprep.subr.bf16.mxu0 %v819
          %1075 = vmatpush1.bf16.msra.mxu0 %v818
          %1076 = vmatprep.subr.bf16.mxu0 %v821
          %1077 = vmatpush1.bf16.msra.mxu0 %v820
          %1078 = vmatprep.subr.bf16.mxu0 %v823
          %1079 = vmatpush1.bf16.msra.mxu0 %v822
          %1080 = vmatprep.subr.bf16.mxu0 %v825
          %1081 = vmatpush1.bf16.msra.mxu0 %v824
          %1082 = vmatprep.subr.bf16.mxu0 %v827
          %1083 = vmatpush1.bf16.msra.mxu0 %v826
          %1084 = vmatprep.subr.bf16.mxu0 %v829
          %1085 = vmatpush1.bf16.msra.mxu0 %v828
          %1086 = vmatprep.subr.bf16.mxu0 %v831
          %1087 = vmatpush1.bf16.msra.mxu0 %v830
          %1088 = vmatprep.subr.bf16.mxu0 %v833
          %1089 = vmatpush1.bf16.msra.mxu0 %v832
          %1090 = vmatprep.subr.bf16.mxu0 %v835
          %1091 = vmatpush1.bf16.msra.mxu0 %v834
          %1092 = vmatprep.subr.bf16.mxu0 %v837
          %1093 = vmatpush1.bf16.msra.mxu0 %v836
          %1094 = vmatprep.subr.bf16.mxu0 %v839
          %1095 = vmatpush1.bf16.msra.mxu0 %v838
          %1096 = vmatprep.subr.bf16.mxu0 %v841
          %1097 = vmatpush1.bf16.msra.mxu0 %v840
          %1098 = vmatprep.mubr.bf16.mxu0 %v1003
          %1099 = vmatmul.mubr.bf16.gmra.mrb[0].mxu0 %v1002
          %v1100 = vpop.f32.mrb[0].mxu0
          %v1101 = vadd.f32 0.0, %v1100
          %v1102 = vpop.f32.mrb[0].mxu0
          %v1103 = vadd.f32 0.0, %v1102
          %v1104 = vpop.f32.mrb[0].mxu0
          %v1105 = vadd.f32 0.0, %v1104
          %v1106 = vpop.f32.mrb[0].mxu0
          %v1107 = vadd.f32 0.0, %v1106
          %1108 = vmatprep.mubr.bf16.mxu0 %v1007
          %1109 = vmatmul.mubr.bf16.gmra.mrb[0].mxu0 %v1006
          %v1110 = vpop.f32.mrb[0].mxu0
          %v1111 = vadd.f32 0.0, %v1110
          %v1112 = vpop.f32.mrb[0].mxu0
          %v1113 = vadd.f32 0.0, %v1112
          %v1114 = vpop.f32.mrb[0].mxu0
          %v1115 = vadd.f32 0.0, %v1114
          %v1116 = vpop.f32.mrb[0].mxu0
          %v1117 = vadd.f32 0.0, %v1116
          %1118 = vmatprep.mubr.bf16.mxu0 %v1011
          %1119 = vmatmul.mubr.bf16.gmra.mrb[0].mxu0 %v1010
          %v1120 = vpop.f32.mrb[0].mxu0
          %v1121 = vadd.f32 0.0, %v1120
          %v1122 = vpop.f32.mrb[0].mxu0
          %v1123 = vadd.f32 0.0, %v1122
          %v1124 = vpop.f32.mrb[0].mxu0
          %v1125 = vadd.f32 0.0, %v1124
          %v1126 = vpop.f32.mrb[0].mxu0
          %v1127 = vadd.f32 0.0, %v1126
          %1128 = vmatprep.mubr.bf16.mxu0 %v1015
          %1129 = vmatmul.mubr.bf16.gmra.mrb[0].mxu0 %v1014
          %v1130 = vpop.f32.mrb[0].mxu0
          %v1131 = vadd.f32 0.0, %v1130
          %v1132 = vpop.f32.mrb[0].mxu0
          %v1133 = vadd.f32 0.0, %v1132
          %v1134 = vpop.f32.mrb[0].mxu0
          %v1135 = vadd.f32 0.0, %v1134
          %v1136 = vpop.f32.mrb[0].mxu0
          %v1137 = vadd.f32 0.0, %v1136
          %1138 = vmatprep.mubr.bf16.mxu0 %v1019
          %1139 = vmatmul.mubr.bf16.gmra.mrb[0].mxu0 %v1018
          %v1140 = vpop.f32.mrb[0].mxu0
          %v1141 = vadd.f32 0.0, %v1140
          %v1142 = vpop.f32.mrb[0].mxu0
          %v1143 = vadd.f32 0.0, %v1142
          %v1144 = vpop.f32.mrb[0].mxu0
          %v1145 = vadd.f32 0.0, %v1144
          %v1146 = vpop.f32.mrb[0].mxu0
          %v1147 = vadd.f32 0.0, %v1146
          %1148 = vmatprep.mubr.bf16.mxu0 %v1023
          %1149 = vmatmul.mubr.bf16.gmra.mrb[0].mxu0 %v1022
          %v1150 = vpop.f32.mrb[0].mxu0
          %v1151 = vadd.f32 0.0, %v1150
          %v1152 = vpop.f32.mrb[0].mxu0
          %v1153 = vadd.f32 0.0, %v1152
          %v1154 = vpop.f32.mrb[0].mxu0
          %v1155 = vadd.f32 0.0, %v1154
          %v1156 = vpop.f32.mrb[0].mxu0
          %v1157 = vadd.f32 0.0, %v1156
          %1158 = vmatprep.mubr.bf16.mxu0 %v1027
          %1159 = vmatmul.mubr.bf16.gmra.mrb[0].mxu0 %v1026
          %v1160 = vpop.f32.mrb[0].mxu0
          %v1161 = vadd.f32 0.0, %v1160
          %v1162 = vpop.f32.mrb[0].mxu0
          %v1163 = vadd.f32 0.0, %v1162
          %v1164 = vpop.f32.mrb[0].mxu0
          %v1165 = vadd.f32 0.0, %v1164
          %v1166 = vpop.f32.mrb[0].mxu0
          %v1167 = vadd.f32 0.0, %v1166
          %1168 = vmatprep.mubr.bf16.mxu0 %v1031
          %1169 = vmatmul.mubr.bf16.gmra.mrb[0].mxu0 %v1030
          %v1170 = vpop.f32.mrb[0].mxu0
          %v1171 = vadd.f32 0.0, %v1170
          %v1172 = vpop.f32.mrb[0].mxu0
          %v1173 = vadd.f32 0.0, %v1172
          %v1174 = vpop.f32.mrb[0].mxu0
          %v1175 = vadd.f32 0.0, %v1174
          %v1176 = vpop.f32.mrb[0].mxu0
          %v1177 = vadd.f32 0.0, %v1176
          %1178 = vdwg.mxu0
          %1179 = vmatprep.subr.bf16.mxu0 %v843
          %1180 = vmatpush1.bf16.msra.mxu0 %v842
          %1181 = vmatprep.subr.bf16.mxu0 %v845
          %1182 = vmatpush1.bf16.msra.mxu0 %v844
          %1183 = vmatprep.subr.bf16.mxu0 %v847
          %1184 = vmatpush1.bf16.msra.mxu0 %v846
          %1185 = vmatprep.subr.bf16.mxu0 %v849
          %1186 = vmatpush1.bf16.msra.mxu0 %v848
          %1187 = vmatprep.subr.bf16.mxu0 %v851
          %1188 = vmatpush1.bf16.msra.mxu0 %v850
          %1189 = vmatprep.subr.bf16.mxu0 %v853
          %1190 = vmatpush1.bf16.msra.mxu0 %v852
          %1191 = vmatprep.subr.bf16.mxu0 %v855
          %1192 = vmatpush1.bf16.msra.mxu0 %v854
          %1193 = vmatprep.subr.bf16.mxu0 %v857
          %1194 = vmatpush1.bf16.msra.mxu0 %v856
          %1195 = vmatprep.subr.bf16.mxu0 %v859
          %1196 = vmatpush1.bf16.msra.mxu0 %v858
          %1197 = vmatprep.subr.bf16.mxu0 %v861
          %1198 = vmatpush1.bf16.msra.mxu0 %v860
          %1199 = vmatprep.subr.bf16.mxu0 %v863
          %1200 = vmatpush1.bf16.msra.mxu0 %v862
          %1201 = vmatprep.subr.bf16.mxu0 %v865
          %1202 = vmatpush1.bf16.msra.mxu0 %v864
          %1203 = vmatprep.subr.bf16.mxu0 %v867
          %1204 = vmatpush1.bf16.msra.mxu0 %v866
          %1205 = vmatprep.subr.bf16.mxu0 %v869
          %1206 = vmatpush1.bf16.msra.mxu0 %v868
          %1207 = vmatprep.subr.bf16.mxu0 %v871
          %1208 = vmatpush1.bf16.msra.mxu0 %v870
          %1209 = vmatprep.subr.bf16.mxu0 %v873
          %1210 = vmatpush1.bf16.msra.mxu0 %v872
          %1211 = vmatprep.mubr.bf16.mxu0 %v1005
          %1212 = vmatmul.mubr.bf16.gmra.mrb[0].mxu0 %v1004
          %v1213 = vpop.f32.mrb[0].mxu0
          %v1214 = vadd.f32 %v1101, %v1213
          %v1215 = vpop.f32.mrb[0].mxu0
          %v1216 = vadd.f32 %v1103, %v1215
          %v1217 = vpop.f32.mrb[0].mxu0
          %v1218 = vadd.f32 %v1105, %v1217
          %v1219 = vpop.f32.mrb[0].mxu0
          %v1220 = vadd.f32 %v1107, %v1219
          %1221 = vmatprep.mubr.bf16.mxu0 %v1009
          %1222 = vmatmul.mubr.bf16.gmra.mrb[0].mxu0 %v1008
          %v1223 = vpop.f32.mrb[0].mxu0
          %v1224 = vadd.f32 %v1111, %v1223
          %v1225 = vpop.f32.mrb[0].mxu0
          %v1226 = vadd.f32 %v1113, %v1225
          %v1227 = vpop.f32.mrb[0].mxu0
          %v1228 = vadd.f32 %v1115, %v1227
          %v1229 = vpop.f32.mrb[0].mxu0
          %v1230 = vadd.f32 %v1117, %v1229
          %1231 = vmatprep.mubr.bf16.mxu0 %v1013
          %1232 = vmatmul.mubr.bf16.gmra.mrb[0].mxu0 %v1012
          %v1233 = vpop.f32.mrb[0].mxu0
          %v1234 = vadd.f32 %v1121, %v1233
          %v1235 = vpop.f32.mrb[0].mxu0
          %v1236 = vadd.f32 %v1123, %v1235
          %v1237 = vpop.f32.mrb[0].mxu0
          %v1238 = vadd.f32 %v1125, %v1237
          %v1239 = vpop.f32.mrb[0].mxu0
          %v1240 = vadd.f32 %v1127, %v1239
          %1241 = vmatprep.mubr.bf16.mxu0 %v1017
          %1242 = vmatmul.mubr.bf16.gmra.mrb[0].mxu0 %v1016
          %v1243 = vpop.f32.mrb[0].mxu0
          %v1244 = vadd.f32 %v1131, %v1243
          %v1245 = vpop.f32.mrb[0].mxu0
          %v1246 = vadd.f32 %v1133, %v1245
          %v1247 = vpop.f32.mrb[0].mxu0
          %v1248 = vadd.f32 %v1135, %v1247
          %v1249 = vpop.f32.mrb[0].mxu0
          %v1250 = vadd.f32 %v1137, %v1249
          %1251 = vmatprep.mubr.bf16.mxu0 %v1021
          %1252 = vmatmul.mubr.bf16.gmra.mrb[0].mxu0 %v1020
          %v1253 = vpop.f32.mrb[0].mxu0
          %v1254 = vadd.f32 %v1141, %v1253
          %v1255 = vpop.f32.mrb[0].mxu0
          %v1256 = vadd.f32 %v1143, %v1255
          %v1257 = vpop.f32.mrb[0].mxu0
          %v1258 = vadd.f32 %v1145, %v1257
          %v1259 = vpop.f32.mrb[0].mxu0
          %v1260 = vadd.f32 %v1147, %v1259
          %1261 = vmatprep.mubr.bf16.mxu0 %v1025
          %1262 = vmatmul.mubr.bf16.gmra.mrb[0].mxu0 %v1024
          %v1263 = vpop.f32.mrb[0].mxu0
          %v1264 = vadd.f32 %v1151, %v1263
          %v1265 = vpop.f32.mrb[0].mxu0
          %v1266 = vadd.f32 %v1153, %v1265
          %v1267 = vpop.f32.mrb[0].mxu0
          %v1268 = vadd.f32 %v1155, %v1267
          %v1269 = vpop.f32.mrb[0].mxu0
          %v1270 = vadd.f32 %v1157, %v1269
          %1271 = vmatprep.mubr.bf16.mxu0 %v1029
          %1272 = vmatmul.mubr.bf16.gmra.mrb[0].mxu0 %v1028
          %v1273 = vpop.f32.mrb[0].mxu0
          %v1274 = vadd.f32 %v1161, %v1273
          %v1275 = vpop.f32.mrb[0].mxu0
          %v1276 = vadd.f32 %v1163, %v1275
          %v1277 = vpop.f32.mrb[0].mxu0
          %v1278 = vadd.f32 %v1165, %v1277
          %v1279 = vpop.f32.mrb[0].mxu0
          %v1280 = vadd.f32 %v1167, %v1279
          %1281 = vmatprep.mubr.bf16.mxu0 %v1033
          %1282 = vmatmul.mubr.bf16.gmra.mrb[0].mxu0 %v1032
          %v1283 = vpop.f32.mrb[0].mxu0
          %v1284 = vadd.f32 %v1171, %v1283
          %v1285 = vpop.f32.mrb[0].mxu0
          %v1286 = vadd.f32 %v1173, %v1285
          %v1287 = vpop.f32.mrb[0].mxu0
          %v1288 = vadd.f32 %v1175, %v1287
          %v1289 = vpop.f32.mrb[0].mxu0
          %v1290 = vadd.f32 %v1177, %v1289
          %1291 = vdwg.mxu0
          %v1292 = vadd.f32 %v1214, %v1254
          %v1293 = vadd.f32 %v1216, %v1256
          %v1294 = vadd.f32 %v1218, %v1258
          %v1295 = vadd.f32 %v1220, %v1260
          %v1296 = vadd.f32 %v1224, %v1264
          %v1297 = vadd.f32 %v1226, %v1266
          %v1298 = vadd.f32 %v1228, %v1268
          %v1299 = vadd.f32 %v1230, %v1270
          %v1300 = vadd.f32 %v1234, %v1274
          %v1301 = vadd.f32 %v1236, %v1276
          %v1302 = vadd.f32 %v1238, %v1278
          %v1303 = vadd.f32 %v1240, %v1280
          %v1304 = vadd.f32 %v1244, %v1284
          %v1305 = vadd.f32 %v1246, %v1286
          %v1306 = vadd.f32 %v1248, %v1288
          %v1307 = vadd.f32 %v1250, %v1290
          %v1308 = vld [vmem:[#allocation2] sm:$0xff]
          %v1309 = vld [vmem:[#allocation2 + $0x8] sm:$0xff]
          %v1310 = vld [vmem:[%s278] ss:$8 sm:$0x3]
          %v1312 = vlaneseq
          %v1313 = vshrl.u32 %v1312, 7
          %v1314 = vsub.s32 0, %v1313
          %v1315 = vrot.slane %v1310, %v1314
          %v1316 = vlaneseq
          %v1317 = vshrl.u32 %v1316, 7
          %v1318 = vsub.s32 1, %v1317
          %v1319 = vrot.slane %v1310, %v1318
          %v1322 = vmul.f32 %v1292, %v1315
          %v1323 = vmul.f32 %v1293, %v1319
          %v1324 = vadd.f32 %v1308, %v1322
          %v1325 = vadd.f32 %v1309, %v1323
          %s1326 = scalar_lea.vmem %s278, 1 [#allocation9]
          %v1327 = vld [vmem:[%s1326] ss:$8 sm:$0x3]
          %v1329 = vlaneseq
          %v1330 = vshrl.u32 %v1329, 7
          %v1331 = vsub.s32 0, %v1330
          %v1332 = vrot.slane %v1327, %v1331
          %v1333 = vlaneseq
          %v1334 = vshrl.u32 %v1333, 7
          %v1335 = vsub.s32 1, %v1334
          %v1336 = vrot.slane %v1327, %v1335
          %v1339 = vmul.f32 %v1294, %v1332
          %v1340 = vmul.f32 %v1295, %v1336
          %v1341 = vadd.f32 %v1324, %v1339
          %v1342 = vadd.f32 %v1325, %v1340
          %s1343 = scalar_lea.vmem %s278, 2 [#allocation9]
          %v1344 = vld [vmem:[%s1343] ss:$8 sm:$0x3]
          %v1346 = vlaneseq
          %v1347 = vshrl.u32 %v1346, 7
          %v1348 = vsub.s32 0, %v1347
          %v1349 = vrot.slane %v1344, %v1348
          %v1350 = vlaneseq
          %v1351 = vshrl.u32 %v1350, 7
          %v1352 = vsub.s32 1, %v1351
          %v1353 = vrot.slane %v1344, %v1352
          %v1356 = vmul.f32 %v1296, %v1349
          %v1357 = vmul.f32 %v1297, %v1353
          %v1358 = vadd.f32 %v1341, %v1356
          %v1359 = vadd.f32 %v1342, %v1357
          %s1360 = scalar_lea.vmem %s278, 3 [#allocation9]
          %v1361 = vld [vmem:[%s1360] ss:$8 sm:$0x3]
          %v1363 = vlaneseq
          %v1364 = vshrl.u32 %v1363, 7
          %v1365 = vsub.s32 0, %v1364
          %v1366 = vrot.slane %v1361, %v1365
          %v1367 = vlaneseq
          %v1368 = vshrl.u32 %v1367, 7
          %v1369 = vsub.s32 1, %v1368
          %v1370 = vrot.slane %v1361, %v1369
          %v1373 = vmul.f32 %v1298, %v1366
          %v1374 = vmul.f32 %v1299, %v1370
          %v1375 = vadd.f32 %v1358, %v1373
          %v1376 = vadd.f32 %v1359, %v1374
          %s1377 = scalar_lea.vmem %s278, 4 [#allocation9]
          %v1378 = vld [vmem:[%s1377] ss:$8 sm:$0x3]
          %v1380 = vlaneseq
          %v1381 = vshrl.u32 %v1380, 7
          %v1382 = vsub.s32 0, %v1381
          %v1383 = vrot.slane %v1378, %v1382
          %v1384 = vlaneseq
          %v1385 = vshrl.u32 %v1384, 7
          %v1386 = vsub.s32 1, %v1385
          %v1387 = vrot.slane %v1378, %v1386
          %v1390 = vmul.f32 %v1300, %v1383
          %v1391 = vmul.f32 %v1301, %v1387
          %v1392 = vadd.f32 %v1375, %v1390
          %v1393 = vadd.f32 %v1376, %v1391
          %s1394 = scalar_lea.vmem %s278, 5 [#allocation9]
          %v1395 = vld [vmem:[%s1394] ss:$8 sm:$0x3]
          %v1397 = vlaneseq
          %v1398 = vshrl.u32 %v1397, 7
          %v1399 = vsub.s32 0, %v1398
          %v1400 = vrot.slane %v1395, %v1399
          %v1401 = vlaneseq
          %v1402 = vshrl.u32 %v1401, 7
          %v1403 = vsub.s32 1, %v1402
          %v1404 = vrot.slane %v1395, %v1403
          %v1407 = vmul.f32 %v1302, %v1400
          %v1408 = vmul.f32 %v1303, %v1404
          %v1409 = vadd.f32 %v1392, %v1407
          %v1410 = vadd.f32 %v1393, %v1408
          %s1411 = scalar_lea.vmem %s278, 6 [#allocation9]
          %v1412 = vld [vmem:[%s1411] ss:$8 sm:$0x3]
          %v1414 = vlaneseq
          %v1415 = vshrl.u32 %v1414, 7
          %v1416 = vsub.s32 0, %v1415
          %v1417 = vrot.slane %v1412, %v1416
          %v1418 = vlaneseq
          %v1419 = vshrl.u32 %v1418, 7
          %v1420 = vsub.s32 1, %v1419
          %v1421 = vrot.slane %v1412, %v1420
          %v1424 = vmul.f32 %v1304, %v1417
          %v1425 = vmul.f32 %v1305, %v1421
          %v1426 = vadd.f32 %v1409, %v1424
          %v1427 = vadd.f32 %v1410, %v1425
          %s1428 = scalar_lea.vmem %s278, 7 [#allocation9]
          %v1429 = vld [vmem:[%s1428] ss:$8 sm:$0x3]
          %v1431 = vlaneseq
          %v1432 = vshrl.u32 %v1431, 7
          %v1433 = vsub.s32 0, %v1432
          %v1434 = vrot.slane %v1429, %v1433
          %v1435 = vlaneseq
          %v1436 = vshrl.u32 %v1435, 7
          %v1437 = vsub.s32 1, %v1436
          %v1438 = vrot.slane %v1429, %v1437
          %v1441 = vmul.f32 %v1306, %v1434
          %v1442 = vmul.f32 %v1307, %v1438
          %v1443 = vadd.f32 %v1426, %v1441
          %v1444 = vadd.f32 %v1427, %v1442
          %1445 = vst [vmem:[#allocation2] sm:$0xff] %v1443
          %1446 = vst [vmem:[#allocation2 + $0x8] sm:$0xff] %v1444
        $region48: #{tpu_custom_call.1} parent=31 // pred_fallthru
          _
        %p1447 = scmp.eq.s32.totalorder %s40, 1
        // Predicated region
        $region49: #{tpu_custom_call.1} parent=31 // pred_check
          %p1448 = pneg %p1447
        $region50: #{tpu_custom_call.1} parent=31 // pred_check_branch
          %1450 = sbr.rel (%p1448) target = $region52
        $region51: #{tpu_custom_call.1} parent=31 // pred_region
          %v1451 = vld [vmem:[#allocation2] sm:$0xff]
          %v1452 = vld [vmem:[#allocation2 + $0x8] sm:$0xff]
          %1453 = vst [vmem:[%s313] sm:$0xff] %v1451
          %1454 = vst [vmem:[%s313 + $0x8] sm:$0xff] %v1452
        $region52: #{tpu_custom_call.1} parent=31 // pred_fallthru
          _
        %s1455 = sand.u32 %s162, 1
        %s1456 = scalar_lea.sflag [#allocation8], %s1455
        %s1457 = sand.u32 %s162, 1
        %s1458 = smul.addr %s1457, 16
        %s1459 = scalar_lea.vmem [#allocation11], %s1458
        // Predicated region
        $region53: #{tpu_custom_call.1} parent=31 // pred_check
          %p1460 = pneg %p172
        $region54: #{tpu_custom_call.1} parent=31 // pred_check_branch
          %1462 = sbr.rel (%p1460) target = $region56
        $region55: #{tpu_custom_call.1} parent=31 // pred_region
          %s1463 = smul.u32 2, %s39
          %s1465 = ssub.s32 256, 256
          %1466 = vsyncadd %s1456, %s1465
          %s1467 = smul.addr %s38, 4
          %s1468 = sadd.s32 %s1463, %s1467
          %s1469 = smul.addr %s1468, 128
          %s1470 = scalar_lea.hbm %s5, %s1469
          %s1472 = sshll.u32 %s1459, 4
          %s1473 = int_to_ptr.vmem [resolvable:$true] %s1472
          %1475 = dma.vmem_to_hbm [thread:$0]  %s1473, 256, %s1470, %s1456
        $region56: #{tpu_custom_call.1} parent=31 // pred_fallthru
          _
      $region32: #{tpu_custom_call.1} parent=5 // pred_fallthru
        _
      %p1476 = scmp.le.s32.totalorder 2, %s28
      // Predicated region
      $region57: #{tpu_custom_call.1} parent=5 // pred_check
        %p1477 = pneg %p1476
      $region58: #{tpu_custom_call.1} parent=5 // pred_check_branch
        %1479 = sbr.rel (%p1477) target = $region60
      $region59: #{tpu_custom_call.1} parent=5 // pred_region
        %s1480 = ssub.s32 %s28, 2
        // Predicated region
        $region61: #{tpu_custom_call.1} parent=59 // pred_check
          %p1481 = pneg %p178
        $region62: #{tpu_custom_call.1} parent=59 // pred_check_branch
          %1483 = sbr.rel (%p1481) target = $region64
        $region63: #{tpu_custom_call.1} parent=59 // pred_region
          %s1484 = sand.u32 %s163, 1
          %s1485 = scalar_lea.sflag [#allocation8], %s1484
          %s1486 = sand.u32 %s163, 1
          %s1487 = smul.addr %s1486, 16
          %s1488 = scalar_lea.vmem [#allocation11], %s1487
          %1489 = dma.done %s1485, 256
        $region64: #{tpu_custom_call.1} parent=59 // pred_fallthru
          _
      $region60: #{tpu_custom_call.1} parent=5 // pred_fallthru
        _
    $region6: #{tpu_custom_call.1} parent=1 // loop_footer
      %s32 = sadd.s32 1, %s28
    $region7: #{tpu_custom_call.1} parent=1 // loop_footer_branch
      %27 = sbr.rel target = $region3
    $region8: #{tpu_custom_call.1} parent=1 // loop_exit
      _
    %1490 = vsyncpa [#allocation7], 1
    %s1491 = scalar_lea.sflag [#allocation7], 1
    %1492 = vsyncpa %s1491, 1
    %1493 = vsyncpa [#allocation10], 1
    %s1494 = scalar_lea.sflag [#allocation10], 1
    %1495 = vsyncpa %s1494, 1
    %1496 = vsyncpa [#allocation8], 1
    %s1497 = scalar_lea.sflag [#allocation8], 1
    %1498 = vsyncpa %s1497, 1

</llo_original>
